<compile_context>
chip_gen: v5e
topology: v5e:2x2
jax: 0.10.0
libtpu: 0.0.40
codegen_flags: <defaults>
</compile_context>

<pallas_src>
import jax
import jax.numpy as jnp
from jax.experimental import pallas as pl
from jax.experimental.pallas import tpu as pltpu

# ----------------------------- static geometry ------------------------------
H0, W0, C0 = 32, 32, 3            # input image (CIFAR-like => fc input of 100)
OC1, K1 = 8, 5
H1, W1 = H0 - K1 + 1, W0 - K1 + 1  # 28, 28   (conv1 output)
HP1, WP1 = H1 // 2, W1 // 2        # 14, 14   (after pool1)
OC2, K2 = 8, 5
H2, W2 = HP1 - K2 + 1, WP1 - K2 + 1  # 10, 10 (conv2a output)
OC3 = 16                           # conv2b output channels
HP2, WP2 = H2 // 2, W2 // 2        # 5, 5     (after pool2)
OC4 = 4                            # conv2c output channels
NCLASS = 10

L1 = WP1 * OC1                     # 112  lanes of conv1/pool1 activations
L2 = W2 * OC2                      # 80   lanes of conv2a activations
L3 = WP2 * OC3                     # 80   lanes of pool2 activations


# ------------------------------- fused kernel -------------------------------
def _net_kernel(x_ref, a1_ref, a2_ref, b3_ref, m_ref,
                st1_ref, st2_ref, st3_ref, beff_ref,
                out_ref, p1_ref, p2_ref):
    f32 = jnp.float32
    bf16 = jnp.bfloat16

    # ---- conv1 (5x5, 3->8) + BN + ReLU + 2x2 maxpool ----
    xim = x_ref[0]                                        # (32, 96) f32
    acc_e = jnp.zeros((H1, L1), f32)                      # even output columns
    acc_o = jnp.zeros((H1, L1), f32)                      # odd  output columns
    for kh in range(K1):
        slab = xim[kh:kh + H1, :].astype(bf16)            # (28, 96)
        acc_e += jnp.dot(slab, a1_ref[0, kh], preferred_element_type=f32)
        acc_o += jnp.dot(slab, a1_ref[1, kh], preferred_element_type=f32)
    s1, t1 = st1_ref[0:1, :], st1_ref[1:2, :]
    ye = jnp.maximum(acc_e * s1 + t1, 0.0)
    yo = jnp.maximum(acc_o * s1 + t1, 0.0)
    ymax = jnp.maximum(ye, yo)                            # (28, 112) column-pooled
    for j in range(HP1):                                  # row-pair max -> (14, 112)
        p1_ref[j:j + 1, :] = jnp.maximum(ymax[2 * j:2 * j + 1, :],
                                         ymax[2 * j + 1:2 * j + 2, :])

    # ---- conv2a (5x5, 8->8) + BN + ReLU ----
    p1 = p1_ref[...]                                      # (14, 112) f32
    acc2 = jnp.zeros((H2, L2), f32)
    for kh in range(K2):
        slab = p1[kh:kh + H2, :].astype(bf16)             # (10, 112)
        acc2 += jnp.dot(slab, a2_ref[kh], preferred_element_type=f32)
    y2 = jnp.maximum(acc2 * st2_ref[0:1, :] + st2_ref[1:2, :], 0.0)   # (10, 80)

    # ---- conv2b (1x1, 8->16) + BN + ReLU + 2x2 maxpool ----
    y2b = y2.astype(bf16)
    ze = jnp.dot(y2b, b3_ref[0], preferred_element_type=f32)          # (10, 80)
    zo = jnp.dot(y2b, b3_ref[1], preferred_element_type=f32)
    s3, t3 = st3_ref[0:1, :], st3_ref[1:2, :]
    ze = jnp.maximum(ze * s3 + t3, 0.0)
    zo = jnp.maximum(zo * s3 + t3, 0.0)
    zc = jnp.maximum(ze, zo)                              # (10, 80) column-pooled
    for j in range(HP2):                                  # row-pair max -> (5, 80)
        p2_ref[j:j + 1, :] = jnp.maximum(zc[2 * j:2 * j + 1, :],
                                         zc[2 * j + 1:2 * j + 2, :])

    # ---- conv2c (1x1, 16->4) + NCHW flatten + fc(100->10), folded into M/beff ----
    acc = beff_ref[...]                                   # (1, 10)
    for r in range(HP2):
        acc = acc + jnp.dot(p2_ref[r:r + 1, :].astype(bf16), m_ref[r],
                            preferred_element_type=f32)
    out_ref[0] = acc


# -------------------------- one-time parameter prep --------------------------
def _fold_bn(bias, gamma, beta, mean, var, eps=1e-5):
    s = gamma / jnp.sqrt(var + eps)
    return s, (bias - mean) * s + beta


def _band_matrices(w_oihw, w_in, out_cols):
    """A[kh][w*IC+ic, j*OC+oc] = w[oc, ic, kh, w - out_cols[j]] (0 outside the band)."""
    oc, ic, kh, kw = w_oihw.shape
    wt = jnp.transpose(w_oihw, (2, 3, 1, 0))               # (KH, KW, IC, OC)
    off = jnp.arange(w_in)[:, None] - out_cols[None, :]    # (W_in, n_out)
    valid = (off >= 0) & (off < kw)
    a = wt[:, jnp.clip(off, 0, kw - 1)]                    # (KH, W_in, n_out, IC, OC)
    a = jnp.where(valid[None, :, :, None, None], a, 0.0)
    a = jnp.transpose(a, (0, 1, 3, 2, 4))                  # (KH, W_in, IC, n_out, OC)
    return a.reshape(kh, w_in * ic, out_cols.shape[0] * oc)


def prepare_params(p):
    f32, bf16 = jnp.float32, jnp.bfloat16
    s1, t1 = _fold_bn(p["c1_b"], p["bn1_g"], p["bn1_b"], p["bn1_m"], p["bn1_v"])
    s2, t2 = _fold_bn(p["c2_b"], p["bn2_g"], p["bn2_b"], p["bn2_m"], p["bn2_v"])
    s3, t3 = _fold_bn(p["c3_b"], p["bn3_g"], p["bn3_b"], p["bn3_m"], p["bn3_v"])

    # conv1 band matrices, split by output-column parity (fuses pool1 columns)
    a1 = jnp.stack(
        [_band_matrices(p["c1_w"], W0, 2 * jnp.arange(WP1) + d) for d in (0, 1)], 0
    )                                                      # (2, 5, 96, 112)
    # conv2a band matrices, all 10 output columns
    a2 = _band_matrices(p["c2_w"], WP1, jnp.arange(W2))    # (5, 112, 80)

    # conv2b (1x1): block-diagonal matrices, split by output-column parity (pool2 columns)
    w3 = p["c3_w"][:, :, 0, 0]                             # (16, 8)
    def _b3(d):
        sel = (jnp.arange(W2)[:, None] == (2 * jnp.arange(WP2) + d)[None, :])
        b = jnp.einsum("ws,oi->wiso", sel.astype(f32), w3)  # (10, 8, 5, 16)
        return b.reshape(W2 * OC2, WP2 * OC3)
    b3 = jnp.stack([_b3(0), _b3(1)], 0)                    # (2, 80, 80)

    # conv2c (1x1) + PyTorch NCHW view(-1,100) + fc folded into per-row matrices
    w4 = p["c4_w"][:, :, 0, 0]                             # (4, 16)
    wfc = p["fc_w"].reshape(NCLASS, OC4, HP2, WP2)         # (10, 4, 5, 5)
    m = jnp.einsum("oc,kors->rsck", w4, wfc).reshape(HP2, WP2 * OC3, NCLASS)
    beff = (p["fc_b"] + jnp.einsum("kors,o->k", wfc, p["c4_b"])).reshape(1, NCLASS)

    # BN scale/shift tiled over the fused (ow, oc) lane layout
    st1 = jnp.stack([jnp.tile(s1, WP1), jnp.tile(t1, WP1)], 0)   # (2, 112)
    st2 = jnp.stack([jnp.tile(s2, W2), jnp.tile(t2, W2)], 0)     # (2, 80)
    st3 = jnp.stack([jnp.tile(s3, WP2), jnp.tile(t3, WP2)], 0)   # (2, 80)

    return dict(
        a1=a1.astype(bf16), a2=a2.astype(bf16), b3=b3.astype(bf16), m=m.astype(bf16),
        st1=st1.astype(f32), st2=st2.astype(f32), st3=st3.astype(f32),
        beff=beff.astype(f32),
    )


# --------------------------------- forward ----------------------------------
@jax.jit
def net_forward(prepped, x_nchw):
    n = x_nchw.shape[0]
    x = jnp.transpose(x_nchw, (0, 2, 3, 1)).astype(jnp.float32)    # NCHW -> NHWC
    x = x.reshape(n, H0, W0 * C0)                                  # (N, 32, 96)

    def full_spec(shape):
        zeros = (0,) * len(shape)
        return pl.BlockSpec(shape, lambda i: zeros)

    out = pl.pallas_call(
        _net_kernel,
        out_shape=jax.ShapeDtypeStruct((n, 1, NCLASS), jnp.float32),
        grid=(n,),
        in_specs=[
            pl.BlockSpec((1, H0, W0 * C0), lambda i: (i, 0, 0)),   # one image / step
            full_spec((2, K1, W0 * C0, L1)),                       # a1
            full_spec((K2, L1, L2)),                               # a2
            full_spec((2, L2, L3)),                                # b3
            full_spec((HP2, L3, NCLASS)),                          # m
            full_spec((2, L1)),                                    # st1
            full_spec((2, L2)),                                    # st2
            full_spec((2, L3)),                                    # st3
            full_spec((1, NCLASS)),                                # beff
        ],
        out_specs=pl.BlockSpec((1, 1, NCLASS), lambda i: (i, 0, 0)),
        scratch_shapes=[
            pltpu.VMEM((HP1, L1), jnp.float32),                    # pool1 output
            pltpu.VMEM((HP2, L3), jnp.float32),                    # pool2 output
        ],
        compiler_params=pltpu.CompilerParams(
            dimension_semantics=("parallel",)),
    )(x, prepped["a1"], prepped["a2"], prepped["b3"], prepped["m"],
      prepped["st1"], prepped["st2"], prepped["st3"], prepped["beff"])
    return out.reshape(n, NCLASS)


# ------------------------------ parameter init -------------------------------
def init_params(key):
    ks = jax.random.split(key, 24)

    def w(k, shape, scale=0.1):
        return (scale * jax.random.normal(k, shape)).astype(jnp.float32)

    def posv(k, shape):  # positive "running_var"
        return (1.0 + 0.1 * jnp.abs(jax.random.normal(k, shape))).astype(jnp.float32)

    p = {}
    # conv1: Conv2d(3, 8, 5) + BatchNorm2d(8)
    p["c1_w"], p["c1_b"] = w(ks[0], (8, 3, 5, 5)), w(ks[1], (8,))
    p["bn1_g"], p["bn1_b"] = 1.0 + w(ks[2], (8,)), w(ks[3], (8,))
    p["bn1_m"], p["bn1_v"] = w(ks[4], (8,)), posv(ks[5], (8,))
    # conv2a: Conv2d(8, 8, 5) + BatchNorm2d(8)
    p["c2_w"], p["c2_b"] = w(ks[6], (8, 8, 5, 5)), w(ks[7], (8,))
    p["bn2_g"], p["bn2_b"] = 1.0 + w(ks[8], (8,)), w(ks[9], (8,))
    p["bn2_m"], p["bn2_v"] = w(ks[10], (8,)), posv(ks[11], (8,))
    # conv2b: Conv2d(8, 16, 1) + BatchNorm2d(16)
    p["c3_w"], p["c3_b"] = w(ks[12], (16, 8, 1, 1)), w(ks[13], (16,))
    p["bn3_g"], p["bn3_b"] = 1.0 + w(ks[14], (16,)), w(ks[15], (16,))
    p["bn3_m"], p["bn3_v"] = w(ks[16], (16,)), posv(ks[17], (16,))
    # conv2c: Conv2d(16, 4, 1)
    p["c4_w"], p["c4_b"] = w(ks[18], (4, 16, 1, 1)), w(ks[19], (4,))
    # fc: Linear(100, 10)   (PyTorch weight layout: (out, in))
    p["fc_w"], p["fc_b"] = w(ks[20], (10, 100)), w(ks[21], (10,))
    return p


if __name__ == "__main__":
    key = jax.random.PRNGKey(0)
    k_params, k_x = jax.random.split(key)
    params = init_params(k_params)
    prepped = prepare_params(params)          # one-time weight/BN prep (hoisted)
    # Input consistent with the module: C*H*W after the conv stack must be 100
    # => 32x32 RGB images (CIFAR-like). Small batch = 2.
    x = jax.random.normal(k_x, (2, 3, 32, 32), dtype=jnp.float32)

    out = net_forward(prepped, x)
    out = jax.block_until_ready(out)
    assert out.shape == (2, 10), out.shape
    assert bool(jnp.all(jnp.isfinite(out)))
    print("KERNEL_OK")
</pallas_src>

<mosaic_0001>
module attributes {stable_mosaic.version = 11 : i64} {
  func.func @_net_kernel(%arg0: i32, %arg1: memref<1x32x96xf32, #tpu.memory_space<vmem>>, %arg2: memref<2x5x96x112xbf16, #tpu.memory_space<vmem>>, %arg3: memref<5x112x80xbf16, #tpu.memory_space<vmem>>, %arg4: memref<2x80x80xbf16, #tpu.memory_space<vmem>>, %arg5: memref<5x80x10xbf16, #tpu.memory_space<vmem>>, %arg6: memref<2x112xf32, #tpu.memory_space<vmem>>, %arg7: memref<2x80xf32, #tpu.memory_space<vmem>>, %arg8: memref<2x80xf32, #tpu.memory_space<vmem>>, %arg9: memref<1x10xf32, #tpu.memory_space<vmem>>, %arg10: memref<1x1x10xf32, #tpu.memory_space<vmem>>, %arg11: memref<14x112xf32, #tpu.memory_space<vmem>>, %arg12: memref<5x80xf32, #tpu.memory_space<vmem>>) attributes {dimension_semantics = [#tpu.dimension_semantics<parallel>], iteration_bounds = array<i64: 2>, scalar_prefetch = 0 : i64, scratch_operands = 2 : i64, tpu.core_type = #tpu.core_type<tc>, window_params = [{transform_indices = @transform_0, window_bounds = array<i64: 1, 32, 96>}, {pipeline_mode = #tpu.pipeline_mode<synchronous>, transform_indices = @transform_1, window_bounds = array<i64: 2, 5, 96, 112>}, {pipeline_mode = #tpu.pipeline_mode<synchronous>, transform_indices = @transform_2, window_bounds = array<i64: 5, 112, 80>}, {pipeline_mode = #tpu.pipeline_mode<synchronous>, transform_indices = @transform_3, window_bounds = array<i64: 2, 80, 80>}, {pipeline_mode = #tpu.pipeline_mode<synchronous>, transform_indices = @transform_4, window_bounds = array<i64: 5, 80, 10>}, {pipeline_mode = #tpu.pipeline_mode<synchronous>, transform_indices = @transform_5, window_bounds = array<i64: 2, 112>}, {pipeline_mode = #tpu.pipeline_mode<synchronous>, transform_indices = @transform_6, window_bounds = array<i64: 2, 80>}, {pipeline_mode = #tpu.pipeline_mode<synchronous>, transform_indices = @transform_7, window_bounds = array<i64: 2, 80>}, {pipeline_mode = #tpu.pipeline_mode<synchronous>, transform_indices = @transform_8, window_bounds = array<i64: 1, 10>}, {transform_indices = @transform_9, window_bounds = array<i64: 1, 1, 10>}]} {
    %c0 = arith.constant 0 : index
    %c0_0 = arith.constant 0 : index
    %c0_1 = arith.constant 0 : index
    %0 = vector.load %arg1[%c0, %c0_0, %c0_1] : memref<1x32x96xf32, #tpu.memory_space<vmem>>, vector<1x32x96xf32>
    %1 = vector.shape_cast %0 : vector<1x32x96xf32> to vector<32x96xf32>
    %cst = arith.constant 0.000000e+00 : f32
    %2 = vector.broadcast %cst : f32 to vector<28x112xf32>
    %cst_2 = arith.constant 0.000000e+00 : f32
    %3 = vector.broadcast %cst_2 : f32 to vector<28x112xf32>
    %4 = vector.extract_strided_slice %1 {offsets = [0, 0], sizes = [28, 96], strides = [1, 1]} : vector<32x96xf32> to vector<28x96xf32>
    %5 = arith.truncf %4 : vector<28x96xf32> to vector<28x96xbf16>
    %c0_3 = arith.constant 0 : index
    %c0_4 = arith.constant 0 : index
    %c0_5 = arith.constant 0 : index
    %c0_6 = arith.constant 0 : index
    %6 = vector.load %arg2[%c0_3, %c0_4, %c0_5, %c0_6] : memref<2x5x96x112xbf16, #tpu.memory_space<vmem>>, vector<1x1x96x112xbf16>
    %7 = vector.shape_cast %6 : vector<1x1x96x112xbf16> to vector<96x112xbf16>
    %cst_7 = arith.constant dense<0.000000e+00> : vector<28x112xf32>
    %8 = tpu.matmul %5, %7, %cst_7 {dimension_numbers = #tpu.dot_dimension_numbers<[1], [0], [0], [1], [0, 0, 1, 1], [], []>} : vector<28x96xbf16>, vector<96x112xbf16>, vector<28x112xf32> -> vector<28x112xf32>
    %9 = arith.addf %2, %8 : vector<28x112xf32>
    %c1 = arith.constant 1 : index
    %c0_8 = arith.constant 0 : index
    %c0_9 = arith.constant 0 : index
    %c0_10 = arith.constant 0 : index
    %10 = vector.load %arg2[%c1, %c0_8, %c0_9, %c0_10] : memref<2x5x96x112xbf16, #tpu.memory_space<vmem>>, vector<1x1x96x112xbf16>
    %11 = vector.shape_cast %10 : vector<1x1x96x112xbf16> to vector<96x112xbf16>
    %cst_11 = arith.constant dense<0.000000e+00> : vector<28x112xf32>
    %12 = tpu.matmul %5, %11, %cst_11 {dimension_numbers = #tpu.dot_dimension_numbers<[1], [0], [0], [1], [0, 0, 1, 1], [], []>} : vector<28x96xbf16>, vector<96x112xbf16>, vector<28x112xf32> -> vector<28x112xf32>
    %13 = arith.addf %3, %12 : vector<28x112xf32>
    %14 = vector.extract_strided_slice %1 {offsets = [1, 0], sizes = [28, 96], strides = [1, 1]} : vector<32x96xf32> to vector<28x96xf32>
    %15 = arith.truncf %14 : vector<28x96xf32> to vector<28x96xbf16>
    %c0_12 = arith.constant 0 : index
    %c1_13 = arith.constant 1 : index
    %c0_14 = arith.constant 0 : index
    %c0_15 = arith.constant 0 : index
    %16 = vector.load %arg2[%c0_12, %c1_13, %c0_14, %c0_15] : memref<2x5x96x112xbf16, #tpu.memory_space<vmem>>, vector<1x1x96x112xbf16>
    %17 = vector.shape_cast %16 : vector<1x1x96x112xbf16> to vector<96x112xbf16>
    %cst_16 = arith.constant dense<0.000000e+00> : vector<28x112xf32>
    %18 = tpu.matmul %15, %17, %cst_16 {dimension_numbers = #tpu.dot_dimension_numbers<[1], [0], [0], [1], [0, 0, 1, 1], [], []>} : vector<28x96xbf16>, vector<96x112xbf16>, vector<28x112xf32> -> vector<28x112xf32>
    %19 = arith.addf %9, %18 : vector<28x112xf32>
    %c1_17 = arith.constant 1 : index
    %c1_18 = arith.constant 1 : index
    %c0_19 = arith.constant 0 : index
    %c0_20 = arith.constant 0 : index
    %20 = vector.load %arg2[%c1_17, %c1_18, %c0_19, %c0_20] : memref<2x5x96x112xbf16, #tpu.memory_space<vmem>>, vector<1x1x96x112xbf16>
    %21 = vector.shape_cast %20 : vector<1x1x96x112xbf16> to vector<96x112xbf16>
    %cst_21 = arith.constant dense<0.000000e+00> : vector<28x112xf32>
    %22 = tpu.matmul %15, %21, %cst_21 {dimension_numbers = #tpu.dot_dimension_numbers<[1], [0], [0], [1], [0, 0, 1, 1], [], []>} : vector<28x96xbf16>, vector<96x112xbf16>, vector<28x112xf32> -> vector<28x112xf32>
    %23 = arith.addf %13, %22 : vector<28x112xf32>
    %24 = vector.extract_strided_slice %1 {offsets = [2, 0], sizes = [28, 96], strides = [1, 1]} : vector<32x96xf32> to vector<28x96xf32>
    %25 = arith.truncf %24 : vector<28x96xf32> to vector<28x96xbf16>
    %c0_22 = arith.constant 0 : index
    %c2 = arith.constant 2 : index
    %c0_23 = arith.constant 0 : index
    %c0_24 = arith.constant 0 : index
    %26 = vector.load %arg2[%c0_22, %c2, %c0_23, %c0_24] : memref<2x5x96x112xbf16, #tpu.memory_space<vmem>>, vector<1x1x96x112xbf16>
    %27 = vector.shape_cast %26 : vector<1x1x96x112xbf16> to vector<96x112xbf16>
    %cst_25 = arith.constant dense<0.000000e+00> : vector<28x112xf32>
    %28 = tpu.matmul %25, %27, %cst_25 {dimension_numbers = #tpu.dot_dimension_numbers<[1], [0], [0], [1], [0, 0, 1, 1], [], []>} : vector<28x96xbf16>, vector<96x112xbf16>, vector<28x112xf32> -> vector<28x112xf32>
    %29 = arith.addf %19, %28 : vector<28x112xf32>
    %c1_26 = arith.constant 1 : index
    %c2_27 = arith.constant 2 : index
    %c0_28 = arith.constant 0 : index
    %c0_29 = arith.constant 0 : index
    %30 = vector.load %arg2[%c1_26, %c2_27, %c0_28, %c0_29] : memref<2x5x96x112xbf16, #tpu.memory_space<vmem>>, vector<1x1x96x112xbf16>
    %31 = vector.shape_cast %30 : vector<1x1x96x112xbf16> to vector<96x112xbf16>
    %cst_30 = arith.constant dense<0.000000e+00> : vector<28x112xf32>
    %32 = tpu.matmul %25, %31, %cst_30 {dimension_numbers = #tpu.dot_dimension_numbers<[1], [0], [0], [1], [0, 0, 1, 1], [], []>} : vector<28x96xbf16>, vector<96x112xbf16>, vector<28x112xf32> -> vector<28x112xf32>
    %33 = arith.addf %23, %32 : vector<28x112xf32>
    %34 = vector.extract_strided_slice %1 {offsets = [3, 0], sizes = [28, 96], strides = [1, 1]} : vector<32x96xf32> to vector<28x96xf32>
    %35 = arith.truncf %34 : vector<28x96xf32> to vector<28x96xbf16>
    %c0_31 = arith.constant 0 : index
    %c3 = arith.constant 3 : index
    %c0_32 = arith.constant 0 : index
    %c0_33 = arith.constant 0 : index
    %36 = vector.load %arg2[%c0_31, %c3, %c0_32, %c0_33] : memref<2x5x96x112xbf16, #tpu.memory_space<vmem>>, vector<1x1x96x112xbf16>
    %37 = vector.shape_cast %36 : vector<1x1x96x112xbf16> to vector<96x112xbf16>
    %cst_34 = arith.constant dense<0.000000e+00> : vector<28x112xf32>
    %38 = tpu.matmul %35, %37, %cst_34 {dimension_numbers = #tpu.dot_dimension_numbers<[1], [0], [0], [1], [0, 0, 1, 1], [], []>} : vector<28x96xbf16>, vector<96x112xbf16>, vector<28x112xf32> -> vector<28x112xf32>
    %39 = arith.addf %29, %38 : vector<28x112xf32>
    %c1_35 = arith.constant 1 : index
    %c3_36 = arith.constant 3 : index
    %c0_37 = arith.constant 0 : index
    %c0_38 = arith.constant 0 : index
    %40 = vector.load %arg2[%c1_35, %c3_36, %c0_37, %c0_38] : memref<2x5x96x112xbf16, #tpu.memory_space<vmem>>, vector<1x1x96x112xbf16>
    %41 = vector.shape_cast %40 : vector<1x1x96x112xbf16> to vector<96x112xbf16>
    %cst_39 = arith.constant dense<0.000000e+00> : vector<28x112xf32>
    %42 = tpu.matmul %35, %41, %cst_39 {dimension_numbers = #tpu.dot_dimension_numbers<[1], [0], [0], [1], [0, 0, 1, 1], [], []>} : vector<28x96xbf16>, vector<96x112xbf16>, vector<28x112xf32> -> vector<28x112xf32>
    %43 = arith.addf %33, %42 : vector<28x112xf32>
    %44 = vector.extract_strided_slice %1 {offsets = [4, 0], sizes = [28, 96], strides = [1, 1]} : vector<32x96xf32> to vector<28x96xf32>
    %45 = arith.truncf %44 : vector<28x96xf32> to vector<28x96xbf16>
    %c0_40 = arith.constant 0 : index
    %c4 = arith.constant 4 : index
    %c0_41 = arith.constant 0 : index
    %c0_42 = arith.constant 0 : index
    %46 = vector.load %arg2[%c0_40, %c4, %c0_41, %c0_42] : memref<2x5x96x112xbf16, #tpu.memory_space<vmem>>, vector<1x1x96x112xbf16>
    %47 = vector.shape_cast %46 : vector<1x1x96x112xbf16> to vector<96x112xbf16>
    %cst_43 = arith.constant dense<0.000000e+00> : vector<28x112xf32>
    %48 = tpu.matmul %45, %47, %cst_43 {dimension_numbers = #tpu.dot_dimension_numbers<[1], [0], [0], [1], [0, 0, 1, 1], [], []>} : vector<28x96xbf16>, vector<96x112xbf16>, vector<28x112xf32> -> vector<28x112xf32>
    %49 = arith.addf %39, %48 : vector<28x112xf32>
    %c1_44 = arith.constant 1 : index
    %c4_45 = arith.constant 4 : index
    %c0_46 = arith.constant 0 : index
    %c0_47 = arith.constant 0 : index
    %50 = vector.load %arg2[%c1_44, %c4_45, %c0_46, %c0_47] : memref<2x5x96x112xbf16, #tpu.memory_space<vmem>>, vector<1x1x96x112xbf16>
    %51 = vector.shape_cast %50 : vector<1x1x96x112xbf16> to vector<96x112xbf16>
    %cst_48 = arith.constant dense<0.000000e+00> : vector<28x112xf32>
    %52 = tpu.matmul %45, %51, %cst_48 {dimension_numbers = #tpu.dot_dimension_numbers<[1], [0], [0], [1], [0, 0, 1, 1], [], []>} : vector<28x96xbf16>, vector<96x112xbf16>, vector<28x112xf32> -> vector<28x112xf32>
    %53 = arith.addf %43, %52 : vector<28x112xf32>
    %c0_49 = arith.constant 0 : index
    %c0_50 = arith.constant 0 : index
    %54 = vector.load %arg6[%c0_49, %c0_50] : memref<2x112xf32, #tpu.memory_space<vmem>>, vector<1x112xf32>
    %c1_51 = arith.constant 1 : index
    %c0_52 = arith.constant 0 : index
    %55 = vector.load %arg6[%c1_51, %c0_52] : memref<2x112xf32, #tpu.memory_space<vmem>>, vector<1x112xf32>
    %56 = vector.broadcast %54 : vector<1x112xf32> to vector<28x112xf32>
    %57 = arith.mulf %49, %56 : vector<28x112xf32>
    %58 = vector.broadcast %55 : vector<1x112xf32> to vector<28x112xf32>
    %59 = arith.addf %57, %58 : vector<28x112xf32>
    %cst_53 = arith.constant 0.000000e+00 : f32
    %60 = vector.broadcast %cst_53 : f32 to vector<28x112xf32>
    %61 = arith.maximumf %59, %60 : vector<28x112xf32>
    %62 = vector.broadcast %54 : vector<1x112xf32> to vector<28x112xf32>
    %63 = arith.mulf %53, %62 : vector<28x112xf32>
    %64 = vector.broadcast %55 : vector<1x112xf32> to vector<28x112xf32>
    %65 = arith.addf %63, %64 : vector<28x112xf32>
    %cst_54 = arith.constant 0.000000e+00 : f32
    %66 = vector.broadcast %cst_54 : f32 to vector<28x112xf32>
    %67 = arith.maximumf %65, %66 : vector<28x112xf32>
    %68 = arith.maximumf %61, %67 : vector<28x112xf32>
    %69 = vector.extract_strided_slice %68 {offsets = [0, 0], sizes = [1, 112], strides = [1, 1]} : vector<28x112xf32> to vector<1x112xf32>
    %70 = vector.extract_strided_slice %68 {offsets = [1, 0], sizes = [1, 112], strides = [1, 1]} : vector<28x112xf32> to vector<1x112xf32>
    %71 = arith.maximumf %69, %70 : vector<1x112xf32>
    %c0_55 = arith.constant 0 : index
    %c0_56 = arith.constant 0 : index
    %72 = vector.load %arg11[%c0_55, %c0_56] : memref<14x112xf32, #tpu.memory_space<vmem>>, vector<1x112xf32>
    tpu.vector_store %arg11[%c0_55, %c0_56], %71 {strides = array<i32>} : memref<14x112xf32, #tpu.memory_space<vmem>>, vector<1x112xf32>,
    %73 = vector.extract_strided_slice %68 {offsets = [2, 0], sizes = [1, 112], strides = [1, 1]} : vector<28x112xf32> to vector<1x112xf32>
    %74 = vector.extract_strided_slice %68 {offsets = [3, 0], sizes = [1, 112], strides = [1, 1]} : vector<28x112xf32> to vector<1x112xf32>
    %75 = arith.maximumf %73, %74 : vector<1x112xf32>
    %c1_57 = arith.constant 1 : index
    %c0_58 = arith.constant 0 : index
    %76 = vector.load %arg11[%c1_57, %c0_58] : memref<14x112xf32, #tpu.memory_space<vmem>>, vector<1x112xf32>
    tpu.vector_store %arg11[%c1_57, %c0_58], %75 {strides = array<i32>} : memref<14x112xf32, #tpu.memory_space<vmem>>, vector<1x112xf32>,
    %77 = vector.extract_strided_slice %68 {offsets = [4, 0], sizes = [1, 112], strides = [1, 1]} : vector<28x112xf32> to vector<1x112xf32>
    %78 = vector.extract_strided_slice %68 {offsets = [5, 0], sizes = [1, 112], strides = [1, 1]} : vector<28x112xf32> to vector<1x112xf32>
    %79 = arith.maximumf %77, %78 : vector<1x112xf32>
    %c2_59 = arith.constant 2 : index
    %c0_60 = arith.constant 0 : index
    %80 = vector.load %arg11[%c2_59, %c0_60] : memref<14x112xf32, #tpu.memory_space<vmem>>, vector<1x112xf32>
    tpu.vector_store %arg11[%c2_59, %c0_60], %79 {strides = array<i32>} : memref<14x112xf32, #tpu.memory_space<vmem>>, vector<1x112xf32>,
    %81 = vector.extract_strided_slice %68 {offsets = [6, 0], sizes = [1, 112], strides = [1, 1]} : vector<28x112xf32> to vector<1x112xf32>
    %82 = vector.extract_strided_slice %68 {offsets = [7, 0], sizes = [1, 112], strides = [1, 1]} : vector<28x112xf32> to vector<1x112xf32>
    %83 = arith.maximumf %81, %82 : vector<1x112xf32>
    %c3_61 = arith.constant 3 : index
    %c0_62 = arith.constant 0 : index
    %84 = vector.load %arg11[%c3_61, %c0_62] : memref<14x112xf32, #tpu.memory_space<vmem>>, vector<1x112xf32>
    tpu.vector_store %arg11[%c3_61, %c0_62], %83 {strides = array<i32>} : memref<14x112xf32, #tpu.memory_space<vmem>>, vector<1x112xf32>,
    %85 = vector.extract_strided_slice %68 {offsets = [8, 0], sizes = [1, 112], strides = [1, 1]} : vector<28x112xf32> to vector<1x112xf32>
    %86 = vector.extract_strided_slice %68 {offsets = [9, 0], sizes = [1, 112], strides = [1, 1]} : vector<28x112xf32> to vector<1x112xf32>
    %87 = arith.maximumf %85, %86 : vector<1x112xf32>
    %c4_63 = arith.constant 4 : index
    %c0_64 = arith.constant 0 : index
    %88 = vector.load %arg11[%c4_63, %c0_64] : memref<14x112xf32, #tpu.memory_space<vmem>>, vector<1x112xf32>
    tpu.vector_store %arg11[%c4_63, %c0_64], %87 {strides = array<i32>} : memref<14x112xf32, #tpu.memory_space<vmem>>, vector<1x112xf32>,
    %89 = vector.extract_strided_slice %68 {offsets = [10, 0], sizes = [1, 112], strides = [1, 1]} : vector<28x112xf32> to vector<1x112xf32>
    %90 = vector.extract_strided_slice %68 {offsets = [11, 0], sizes = [1, 112], strides = [1, 1]} : vector<28x112xf32> to vector<1x112xf32>
    %91 = arith.maximumf %89, %90 : vector<1x112xf32>
    %c5 = arith.constant 5 : index
    %c0_65 = arith.constant 0 : index
    %92 = vector.load %arg11[%c5, %c0_65] : memref<14x112xf32, #tpu.memory_space<vmem>>, vector<1x112xf32>
    tpu.vector_store %arg11[%c5, %c0_65], %91 {strides = array<i32>} : memref<14x112xf32, #tpu.memory_space<vmem>>, vector<1x112xf32>,
    %93 = vector.extract_strided_slice %68 {offsets = [12, 0], sizes = [1, 112], strides = [1, 1]} : vector<28x112xf32> to vector<1x112xf32>
    %94 = vector.extract_strided_slice %68 {offsets = [13, 0], sizes = [1, 112], strides = [1, 1]} : vector<28x112xf32> to vector<1x112xf32>
    %95 = arith.maximumf %93, %94 : vector<1x112xf32>
    %c6 = arith.constant 6 : index
    %c0_66 = arith.constant 0 : index
    %96 = vector.load %arg11[%c6, %c0_66] : memref<14x112xf32, #tpu.memory_space<vmem>>, vector<1x112xf32>
    tpu.vector_store %arg11[%c6, %c0_66], %95 {strides = array<i32>} : memref<14x112xf32, #tpu.memory_space<vmem>>, vector<1x112xf32>,
    %97 = vector.extract_strided_slice %68 {offsets = [14, 0], sizes = [1, 112], strides = [1, 1]} : vector<28x112xf32> to vector<1x112xf32>
    %98 = vector.extract_strided_slice %68 {offsets = [15, 0], sizes = [1, 112], strides = [1, 1]} : vector<28x112xf32> to vector<1x112xf32>
    %99 = arith.maximumf %97, %98 : vector<1x112xf32>
    %c7 = arith.constant 7 : index
    %c0_67 = arith.constant 0 : index
    %100 = vector.load %arg11[%c7, %c0_67] : memref<14x112xf32, #tpu.memory_space<vmem>>, vector<1x112xf32>
    tpu.vector_store %arg11[%c7, %c0_67], %99 {strides = array<i32>} : memref<14x112xf32, #tpu.memory_space<vmem>>, vector<1x112xf32>,
    %101 = vector.extract_strided_slice %68 {offsets = [16, 0], sizes = [1, 112], strides = [1, 1]} : vector<28x112xf32> to vector<1x112xf32>
    %102 = vector.extract_strided_slice %68 {offsets = [17, 0], sizes = [1, 112], strides = [1, 1]} : vector<28x112xf32> to vector<1x112xf32>
    %103 = arith.maximumf %101, %102 : vector<1x112xf32>
    %c8 = arith.constant 8 : index
    %c0_68 = arith.constant 0 : index
    %104 = vector.load %arg11[%c8, %c0_68] : memref<14x112xf32, #tpu.memory_space<vmem>>, vector<1x112xf32>
    tpu.vector_store %arg11[%c8, %c0_68], %103 {strides = array<i32>} : memref<14x112xf32, #tpu.memory_space<vmem>>, vector<1x112xf32>,
    %105 = vector.extract_strided_slice %68 {offsets = [18, 0], sizes = [1, 112], strides = [1, 1]} : vector<28x112xf32> to vector<1x112xf32>
    %106 = vector.extract_strided_slice %68 {offsets = [19, 0], sizes = [1, 112], strides = [1, 1]} : vector<28x112xf32> to vector<1x112xf32>
    %107 = arith.maximumf %105, %106 : vector<1x112xf32>
    %c9 = arith.constant 9 : index
    %c0_69 = arith.constant 0 : index
    %108 = vector.load %arg11[%c9, %c0_69] : memref<14x112xf32, #tpu.memory_space<vmem>>, vector<1x112xf32>
    tpu.vector_store %arg11[%c9, %c0_69], %107 {strides = array<i32>} : memref<14x112xf32, #tpu.memory_space<vmem>>, vector<1x112xf32>,
    %109 = vector.extract_strided_slice %68 {offsets = [20, 0], sizes = [1, 112], strides = [1, 1]} : vector<28x112xf32> to vector<1x112xf32>
    %110 = vector.extract_strided_slice %68 {offsets = [21, 0], sizes = [1, 112], strides = [1, 1]} : vector<28x112xf32> to vector<1x112xf32>
    %111 = arith.maximumf %109, %110 : vector<1x112xf32>
    %c10 = arith.constant 10 : index
    %c0_70 = arith.constant 0 : index
    %112 = vector.load %arg11[%c10, %c0_70] : memref<14x112xf32, #tpu.memory_space<vmem>>, vector<1x112xf32>
    tpu.vector_store %arg11[%c10, %c0_70], %111 {strides = array<i32>} : memref<14x112xf32, #tpu.memory_space<vmem>>, vector<1x112xf32>,
    %113 = vector.extract_strided_slice %68 {offsets = [22, 0], sizes = [1, 112], strides = [1, 1]} : vector<28x112xf32> to vector<1x112xf32>
    %114 = vector.extract_strided_slice %68 {offsets = [23, 0], sizes = [1, 112], strides = [1, 1]} : vector<28x112xf32> to vector<1x112xf32>
    %115 = arith.maximumf %113, %114 : vector<1x112xf32>
    %c11 = arith.constant 11 : index
    %c0_71 = arith.constant 0 : index
    %116 = vector.load %arg11[%c11, %c0_71] : memref<14x112xf32, #tpu.memory_space<vmem>>, vector<1x112xf32>
    tpu.vector_store %arg11[%c11, %c0_71], %115 {strides = array<i32>} : memref<14x112xf32, #tpu.memory_space<vmem>>, vector<1x112xf32>,
    %117 = vector.extract_strided_slice %68 {offsets = [24, 0], sizes = [1, 112], strides = [1, 1]} : vector<28x112xf32> to vector<1x112xf32>
    %118 = vector.extract_strided_slice %68 {offsets = [25, 0], sizes = [1, 112], strides = [1, 1]} : vector<28x112xf32> to vector<1x112xf32>
    %119 = arith.maximumf %117, %118 : vector<1x112xf32>
    %c12 = arith.constant 12 : index
    %c0_72 = arith.constant 0 : index
    %120 = vector.load %arg11[%c12, %c0_72] : memref<14x112xf32, #tpu.memory_space<vmem>>, vector<1x112xf32>
    tpu.vector_store %arg11[%c12, %c0_72], %119 {strides = array<i32>} : memref<14x112xf32, #tpu.memory_space<vmem>>, vector<1x112xf32>,
    %121 = vector.extract_strided_slice %68 {offsets = [26, 0], sizes = [1, 112], strides = [1, 1]} : vector<28x112xf32> to vector<1x112xf32>
    %122 = vector.extract_strided_slice %68 {offsets = [27, 0], sizes = [1, 112], strides = [1, 1]} : vector<28x112xf32> to vector<1x112xf32>
    %123 = arith.maximumf %121, %122 : vector<1x112xf32>
    %c13 = arith.constant 13 : index
    %c0_73 = arith.constant 0 : index
    %124 = vector.load %arg11[%c13, %c0_73] : memref<14x112xf32, #tpu.memory_space<vmem>>, vector<1x112xf32>
    tpu.vector_store %arg11[%c13, %c0_73], %123 {strides = array<i32>} : memref<14x112xf32, #tpu.memory_space<vmem>>, vector<1x112xf32>,
    %c0_74 = arith.constant 0 : index
    %c0_75 = arith.constant 0 : index
    %125 = vector.load %arg11[%c0_74, %c0_75] : memref<14x112xf32, #tpu.memory_space<vmem>>, vector<14x112xf32>
    %cst_76 = arith.constant 0.000000e+00 : f32
    %126 = vector.broadcast %cst_76 : f32 to vector<10x80xf32>
    %127 = vector.extract_strided_slice %125 {offsets = [0, 0], sizes = [10, 112], strides = [1, 1]} : vector<14x112xf32> to vector<10x112xf32>
    %128 = arith.truncf %127 : vector<10x112xf32> to vector<10x112xbf16>
    %c0_77 = arith.constant 0 : index
    %c0_78 = arith.constant 0 : index
    %c0_79 = arith.constant 0 : index
    %129 = vector.load %arg3[%c0_77, %c0_78, %c0_79] : memref<5x112x80xbf16, #tpu.memory_space<vmem>>, vector<1x112x80xbf16>
    %130 = vector.shape_cast %129 : vector<1x112x80xbf16> to vector<112x80xbf16>
    %cst_80 = arith.constant dense<0.000000e+00> : vector<10x80xf32>
    %131 = tpu.matmul %128, %130, %cst_80 {dimension_numbers = #tpu.dot_dimension_numbers<[1], [0], [0], [1], [0, 0, 1, 1], [], []>} : vector<10x112xbf16>, vector<112x80xbf16>, vector<10x80xf32> -> vector<10x80xf32>
    %132 = arith.addf %126, %131 : vector<10x80xf32>
    %133 = vector.extract_strided_slice %125 {offsets = [1, 0], sizes = [10, 112], strides = [1, 1]} : vector<14x112xf32> to vector<10x112xf32>
    %134 = arith.truncf %133 : vector<10x112xf32> to vector<10x112xbf16>
    %c1_81 = arith.constant 1 : index
    %c0_82 = arith.constant 0 : index
    %c0_83 = arith.constant 0 : index
    %135 = vector.load %arg3[%c1_81, %c0_82, %c0_83] : memref<5x112x80xbf16, #tpu.memory_space<vmem>>, vector<1x112x80xbf16>
    %136 = vector.shape_cast %135 : vector<1x112x80xbf16> to vector<112x80xbf16>
    %cst_84 = arith.constant dense<0.000000e+00> : vector<10x80xf32>
    %137 = tpu.matmul %134, %136, %cst_84 {dimension_numbers = #tpu.dot_dimension_numbers<[1], [0], [0], [1], [0, 0, 1, 1], [], []>} : vector<10x112xbf16>, vector<112x80xbf16>, vector<10x80xf32> -> vector<10x80xf32>
    %138 = arith.addf %132, %137 : vector<10x80xf32>
    %139 = vector.extract_strided_slice %125 {offsets = [2, 0], sizes = [10, 112], strides = [1, 1]} : vector<14x112xf32> to vector<10x112xf32>
    %140 = arith.truncf %139 : vector<10x112xf32> to vector<10x112xbf16>
    %c2_85 = arith.constant 2 : index
    %c0_86 = arith.constant 0 : index
    %c0_87 = arith.constant 0 : index
    %141 = vector.load %arg3[%c2_85, %c0_86, %c0_87] : memref<5x112x80xbf16, #tpu.memory_space<vmem>>, vector<1x112x80xbf16>
    %142 = vector.shape_cast %141 : vector<1x112x80xbf16> to vector<112x80xbf16>
    %cst_88 = arith.constant dense<0.000000e+00> : vector<10x80xf32>
    %143 = tpu.matmul %140, %142, %cst_88 {dimension_numbers = #tpu.dot_dimension_numbers<[1], [0], [0], [1], [0, 0, 1, 1], [], []>} : vector<10x112xbf16>, vector<112x80xbf16>, vector<10x80xf32> -> vector<10x80xf32>
    %144 = arith.addf %138, %143 : vector<10x80xf32>
    %145 = vector.extract_strided_slice %125 {offsets = [3, 0], sizes = [10, 112], strides = [1, 1]} : vector<14x112xf32> to vector<10x112xf32>
    %146 = arith.truncf %145 : vector<10x112xf32> to vector<10x112xbf16>
    %c3_89 = arith.constant 3 : index
    %c0_90 = arith.constant 0 : index
    %c0_91 = arith.constant 0 : index
    %147 = vector.load %arg3[%c3_89, %c0_90, %c0_91] : memref<5x112x80xbf16, #tpu.memory_space<vmem>>, vector<1x112x80xbf16>
    %148 = vector.shape_cast %147 : vector<1x112x80xbf16> to vector<112x80xbf16>
    %cst_92 = arith.constant dense<0.000000e+00> : vector<10x80xf32>
    %149 = tpu.matmul %146, %148, %cst_92 {dimension_numbers = #tpu.dot_dimension_numbers<[1], [0], [0], [1], [0, 0, 1, 1], [], []>} : vector<10x112xbf16>, vector<112x80xbf16>, vector<10x80xf32> -> vector<10x80xf32>
    %150 = arith.addf %144, %149 : vector<10x80xf32>
    %151 = vector.extract_strided_slice %125 {offsets = [4, 0], sizes = [10, 112], strides = [1, 1]} : vector<14x112xf32> to vector<10x112xf32>
    %152 = arith.truncf %151 : vector<10x112xf32> to vector<10x112xbf16>
    %c4_93 = arith.constant 4 : index
    %c0_94 = arith.constant 0 : index
    %c0_95 = arith.constant 0 : index
    %153 = vector.load %arg3[%c4_93, %c0_94, %c0_95] : memref<5x112x80xbf16, #tpu.memory_space<vmem>>, vector<1x112x80xbf16>
    %154 = vector.shape_cast %153 : vector<1x112x80xbf16> to vector<112x80xbf16>
    %cst_96 = arith.constant dense<0.000000e+00> : vector<10x80xf32>
    %155 = tpu.matmul %152, %154, %cst_96 {dimension_numbers = #tpu.dot_dimension_numbers<[1], [0], [0], [1], [0, 0, 1, 1], [], []>} : vector<10x112xbf16>, vector<112x80xbf16>, vector<10x80xf32> -> vector<10x80xf32>
    %156 = arith.addf %150, %155 : vector<10x80xf32>
    %c0_97 = arith.constant 0 : index
    %c0_98 = arith.constant 0 : index
    %157 = vector.load %arg7[%c0_97, %c0_98] : memref<2x80xf32, #tpu.memory_space<vmem>>, vector<1x80xf32>
    %158 = vector.broadcast %157 : vector<1x80xf32> to vector<10x80xf32>
    %159 = arith.mulf %156, %158 : vector<10x80xf32>
    %c1_99 = arith.constant 1 : index
    %c0_100 = arith.constant 0 : index
    %160 = vector.load %arg7[%c1_99, %c0_100] : memref<2x80xf32, #tpu.memory_space<vmem>>, vector<1x80xf32>
    %161 = vector.broadcast %160 : vector<1x80xf32> to vector<10x80xf32>
    %162 = arith.addf %159, %161 : vector<10x80xf32>
    %cst_101 = arith.constant 0.000000e+00 : f32
    %163 = vector.broadcast %cst_101 : f32 to vector<10x80xf32>
    %164 = arith.maximumf %162, %163 : vector<10x80xf32>
    %165 = arith.truncf %164 : vector<10x80xf32> to vector<10x80xbf16>
    %c0_102 = arith.constant 0 : index
    %c0_103 = arith.constant 0 : index
    %c0_104 = arith.constant 0 : index
    %166 = vector.load %arg4[%c0_102, %c0_103, %c0_104] : memref<2x80x80xbf16, #tpu.memory_space<vmem>>, vector<1x80x80xbf16>
    %167 = vector.shape_cast %166 : vector<1x80x80xbf16> to vector<80x80xbf16>
    %cst_105 = arith.constant dense<0.000000e+00> : vector<10x80xf32>
    %168 = tpu.matmul %165, %167, %cst_105 {dimension_numbers = #tpu.dot_dimension_numbers<[1], [0], [0], [1], [0, 0, 1, 1], [], []>} : vector<10x80xbf16>, vector<80x80xbf16>, vector<10x80xf32> -> vector<10x80xf32>
    %c1_106 = arith.constant 1 : index
    %c0_107 = arith.constant 0 : index
    %c0_108 = arith.constant 0 : index
    %169 = vector.load %arg4[%c1_106, %c0_107, %c0_108] : memref<2x80x80xbf16, #tpu.memory_space<vmem>>, vector<1x80x80xbf16>
    %170 = vector.shape_cast %169 : vector<1x80x80xbf16> to vector<80x80xbf16>
    %cst_109 = arith.constant dense<0.000000e+00> : vector<10x80xf32>
    %171 = tpu.matmul %165, %170, %cst_109 {dimension_numbers = #tpu.dot_dimension_numbers<[1], [0], [0], [1], [0, 0, 1, 1], [], []>} : vector<10x80xbf16>, vector<80x80xbf16>, vector<10x80xf32> -> vector<10x80xf32>
    %c0_110 = arith.constant 0 : index
    %c0_111 = arith.constant 0 : index
    %172 = vector.load %arg8[%c0_110, %c0_111] : memref<2x80xf32, #tpu.memory_space<vmem>>, vector<1x80xf32>
    %c1_112 = arith.constant 1 : index
    %c0_113 = arith.constant 0 : index
    %173 = vector.load %arg8[%c1_112, %c0_113] : memref<2x80xf32, #tpu.memory_space<vmem>>, vector<1x80xf32>
    %174 = vector.broadcast %172 : vector<1x80xf32> to vector<10x80xf32>
    %175 = arith.mulf %168, %174 : vector<10x80xf32>
    %176 = vector.broadcast %173 : vector<1x80xf32> to vector<10x80xf32>
    %177 = arith.addf %175, %176 : vector<10x80xf32>
    %cst_114 = arith.constant 0.000000e+00 : f32
    %178 = vector.broadcast %cst_114 : f32 to vector<10x80xf32>
    %179 = arith.maximumf %177, %178 : vector<10x80xf32>
    %180 = vector.broadcast %172 : vector<1x80xf32> to vector<10x80xf32>
    %181 = arith.mulf %171, %180 : vector<10x80xf32>
    %182 = vector.broadcast %173 : vector<1x80xf32> to vector<10x80xf32>
    %183 = arith.addf %181, %182 : vector<10x80xf32>
    %cst_115 = arith.constant 0.000000e+00 : f32
    %184 = vector.broadcast %cst_115 : f32 to vector<10x80xf32>
    %185 = arith.maximumf %183, %184 : vector<10x80xf32>
    %186 = arith.maximumf %179, %185 : vector<10x80xf32>
    %187 = vector.extract_strided_slice %186 {offsets = [0, 0], sizes = [1, 80], strides = [1, 1]} : vector<10x80xf32> to vector<1x80xf32>
    %188 = vector.extract_strided_slice %186 {offsets = [1, 0], sizes = [1, 80], strides = [1, 1]} : vector<10x80xf32> to vector<1x80xf32>
    %189 = arith.maximumf %187, %188 : vector<1x80xf32>
    %c0_116 = arith.constant 0 : index
    %c0_117 = arith.constant 0 : index
    %190 = vector.load %arg12[%c0_116, %c0_117] : memref<5x80xf32, #tpu.memory_space<vmem>>, vector<1x80xf32>
    tpu.vector_store %arg12[%c0_116, %c0_117], %189 {strides = array<i32>} : memref<5x80xf32, #tpu.memory_space<vmem>>, vector<1x80xf32>,
    %191 = vector.extract_strided_slice %186 {offsets = [2, 0], sizes = [1, 80], strides = [1, 1]} : vector<10x80xf32> to vector<1x80xf32>
    %192 = vector.extract_strided_slice %186 {offsets = [3, 0], sizes = [1, 80], strides = [1, 1]} : vector<10x80xf32> to vector<1x80xf32>
    %193 = arith.maximumf %191, %192 : vector<1x80xf32>
    %c1_118 = arith.constant 1 : index
    %c0_119 = arith.constant 0 : index
    %194 = vector.load %arg12[%c1_118, %c0_119] : memref<5x80xf32, #tpu.memory_space<vmem>>, vector<1x80xf32>
    tpu.vector_store %arg12[%c1_118, %c0_119], %193 {strides = array<i32>} : memref<5x80xf32, #tpu.memory_space<vmem>>, vector<1x80xf32>,
    %195 = vector.extract_strided_slice %186 {offsets = [4, 0], sizes = [1, 80], strides = [1, 1]} : vector<10x80xf32> to vector<1x80xf32>
    %196 = vector.extract_strided_slice %186 {offsets = [5, 0], sizes = [1, 80], strides = [1, 1]} : vector<10x80xf32> to vector<1x80xf32>
    %197 = arith.maximumf %195, %196 : vector<1x80xf32>
    %c2_120 = arith.constant 2 : index
    %c0_121 = arith.constant 0 : index
    %198 = vector.load %arg12[%c2_120, %c0_121] : memref<5x80xf32, #tpu.memory_space<vmem>>, vector<1x80xf32>
    tpu.vector_store %arg12[%c2_120, %c0_121], %197 {strides = array<i32>} : memref<5x80xf32, #tpu.memory_space<vmem>>, vector<1x80xf32>,
    %199 = vector.extract_strided_slice %186 {offsets = [6, 0], sizes = [1, 80], strides = [1, 1]} : vector<10x80xf32> to vector<1x80xf32>
    %200 = vector.extract_strided_slice %186 {offsets = [7, 0], sizes = [1, 80], strides = [1, 1]} : vector<10x80xf32> to vector<1x80xf32>
    %201 = arith.maximumf %199, %200 : vector<1x80xf32>
    %c3_122 = arith.constant 3 : index
    %c0_123 = arith.constant 0 : index
    %202 = vector.load %arg12[%c3_122, %c0_123] : memref<5x80xf32, #tpu.memory_space<vmem>>, vector<1x80xf32>
    tpu.vector_store %arg12[%c3_122, %c0_123], %201 {strides = array<i32>} : memref<5x80xf32, #tpu.memory_space<vmem>>, vector<1x80xf32>,
    %203 = vector.extract_strided_slice %186 {offsets = [8, 0], sizes = [1, 80], strides = [1, 1]} : vector<10x80xf32> to vector<1x80xf32>
    %204 = vector.extract_strided_slice %186 {offsets = [9, 0], sizes = [1, 80], strides = [1, 1]} : vector<10x80xf32> to vector<1x80xf32>
    %205 = arith.maximumf %203, %204 : vector<1x80xf32>
    %c4_124 = arith.constant 4 : index
    %c0_125 = arith.constant 0 : index
    %206 = vector.load %arg12[%c4_124, %c0_125] : memref<5x80xf32, #tpu.memory_space<vmem>>, vector<1x80xf32>
    tpu.vector_store %arg12[%c4_124, %c0_125], %205 {strides = array<i32>} : memref<5x80xf32, #tpu.memory_space<vmem>>, vector<1x80xf32>,
    %c0_126 = arith.constant 0 : index
    %c0_127 = arith.constant 0 : index
    %207 = vector.load %arg9[%c0_126, %c0_127] : memref<1x10xf32, #tpu.memory_space<vmem>>, vector<1x10xf32>
    %c0_128 = arith.constant 0 : index
    %c0_129 = arith.constant 0 : index
    %208 = vector.load %arg12[%c0_128, %c0_129] : memref<5x80xf32, #tpu.memory_space<vmem>>, vector<1x80xf32>
    %209 = arith.truncf %208 : vector<1x80xf32> to vector<1x80xbf16>
    %c0_130 = arith.constant 0 : index
    %c0_131 = arith.constant 0 : index
    %c0_132 = arith.constant 0 : index
    %210 = vector.load %arg5[%c0_130, %c0_131, %c0_132] : memref<5x80x10xbf16, #tpu.memory_space<vmem>>, vector<1x80x10xbf16>
    %211 = vector.shape_cast %210 : vector<1x80x10xbf16> to vector<80x10xbf16>
    %cst_133 = arith.constant dense<0.000000e+00> : vector<1x10xf32>
    %212 = tpu.matmul %209, %211, %cst_133 {dimension_numbers = #tpu.dot_dimension_numbers<[1], [0], [0], [1], [0, 0, 1, 1], [], []>} : vector<1x80xbf16>, vector<80x10xbf16>, vector<1x10xf32> -> vector<1x10xf32>
    %213 = arith.addf %207, %212 : vector<1x10xf32>
    %c1_134 = arith.constant 1 : index
    %c0_135 = arith.constant 0 : index
    %214 = vector.load %arg12[%c1_134, %c0_135] : memref<5x80xf32, #tpu.memory_space<vmem>>, vector<1x80xf32>
    %215 = arith.truncf %214 : vector<1x80xf32> to vector<1x80xbf16>
    %c1_136 = arith.constant 1 : index
    %c0_137 = arith.constant 0 : index
    %c0_138 = arith.constant 0 : index
    %216 = vector.load %arg5[%c1_136, %c0_137, %c0_138] : memref<5x80x10xbf16, #tpu.memory_space<vmem>>, vector<1x80x10xbf16>
    %217 = vector.shape_cast %216 : vector<1x80x10xbf16> to vector<80x10xbf16>
    %cst_139 = arith.constant dense<0.000000e+00> : vector<1x10xf32>
    %218 = tpu.matmul %215, %217, %cst_139 {dimension_numbers = #tpu.dot_dimension_numbers<[1], [0], [0], [1], [0, 0, 1, 1], [], []>} : vector<1x80xbf16>, vector<80x10xbf16>, vector<1x10xf32> -> vector<1x10xf32>
    %219 = arith.addf %213, %218 : vector<1x10xf32>
    %c2_140 = arith.constant 2 : index
    %c0_141 = arith.constant 0 : index
    %220 = vector.load %arg12[%c2_140, %c0_141] : memref<5x80xf32, #tpu.memory_space<vmem>>, vector<1x80xf32>
    %221 = arith.truncf %220 : vector<1x80xf32> to vector<1x80xbf16>
    %c2_142 = arith.constant 2 : index
    %c0_143 = arith.constant 0 : index
    %c0_144 = arith.constant 0 : index
    %222 = vector.load %arg5[%c2_142, %c0_143, %c0_144] : memref<5x80x10xbf16, #tpu.memory_space<vmem>>, vector<1x80x10xbf16>
    %223 = vector.shape_cast %222 : vector<1x80x10xbf16> to vector<80x10xbf16>
    %cst_145 = arith.constant dense<0.000000e+00> : vector<1x10xf32>
    %224 = tpu.matmul %221, %223, %cst_145 {dimension_numbers = #tpu.dot_dimension_numbers<[1], [0], [0], [1], [0, 0, 1, 1], [], []>} : vector<1x80xbf16>, vector<80x10xbf16>, vector<1x10xf32> -> vector<1x10xf32>
    %225 = arith.addf %219, %224 : vector<1x10xf32>
    %c3_146 = arith.constant 3 : index
    %c0_147 = arith.constant 0 : index
    %226 = vector.load %arg12[%c3_146, %c0_147] : memref<5x80xf32, #tpu.memory_space<vmem>>, vector<1x80xf32>
    %227 = arith.truncf %226 : vector<1x80xf32> to vector<1x80xbf16>
    %c3_148 = arith.constant 3 : index
    %c0_149 = arith.constant 0 : index
    %c0_150 = arith.constant 0 : index
    %228 = vector.load %arg5[%c3_148, %c0_149, %c0_150] : memref<5x80x10xbf16, #tpu.memory_space<vmem>>, vector<1x80x10xbf16>
    %229 = vector.shape_cast %228 : vector<1x80x10xbf16> to vector<80x10xbf16>
    %cst_151 = arith.constant dense<0.000000e+00> : vector<1x10xf32>
    %230 = tpu.matmul %227, %229, %cst_151 {dimension_numbers = #tpu.dot_dimension_numbers<[1], [0], [0], [1], [0, 0, 1, 1], [], []>} : vector<1x80xbf16>, vector<80x10xbf16>, vector<1x10xf32> -> vector<1x10xf32>
    %231 = arith.addf %225, %230 : vector<1x10xf32>
    %c4_152 = arith.constant 4 : index
    %c0_153 = arith.constant 0 : index
    %232 = vector.load %arg12[%c4_152, %c0_153] : memref<5x80xf32, #tpu.memory_space<vmem>>, vector<1x80xf32>
    %233 = arith.truncf %232 : vector<1x80xf32> to vector<1x80xbf16>
    %c4_154 = arith.constant 4 : index
    %c0_155 = arith.constant 0 : index
    %c0_156 = arith.constant 0 : index
    %234 = vector.load %arg5[%c4_154, %c0_155, %c0_156] : memref<5x80x10xbf16, #tpu.memory_space<vmem>>, vector<1x80x10xbf16>
    %235 = vector.shape_cast %234 : vector<1x80x10xbf16> to vector<80x10xbf16>
    %cst_157 = arith.constant dense<0.000000e+00> : vector<1x10xf32>
    %236 = tpu.matmul %233, %235, %cst_157 {dimension_numbers = #tpu.dot_dimension_numbers<[1], [0], [0], [1], [0, 0, 1, 1], [], []>} : vector<1x80xbf16>, vector<80x10xbf16>, vector<1x10xf32> -> vector<1x10xf32>
    %237 = arith.addf %231, %236 : vector<1x10xf32>
    %c0_158 = arith.constant 0 : index
    %c0_159 = arith.constant 0 : index
    %c0_160 = arith.constant 0 : index
    %238 = vector.load %arg10[%c0_158, %c0_159, %c0_160] : memref<1x1x10xf32, #tpu.memory_space<vmem>>, vector<1x1x10xf32>
    %239 = vector.shape_cast %238 : vector<1x1x10xf32> to vector<1x10xf32>
    %240 = vector.shape_cast %237 : vector<1x10xf32> to vector<1x1x10xf32>
    tpu.vector_store %arg10[%c0_158, %c0_159, %c0_160], %240 {strides = array<i32>} : memref<1x1x10xf32, #tpu.memory_space<vmem>>, vector<1x1x10xf32>,
    return
  }
  func.func @transform_0(%arg0: i32) -> (i32, i32, i32) {
    %c0_i32 = arith.constant 0 : i32
    %c0_i32_0 = arith.constant 0 : i32
    %c0_i32_1 = arith.constant 0 : i32
    return %arg0, %c0_i32, %c0_i32_0 : i32, i32, i32
  }
  func.func @transform_1(%arg0: i32) -> (i32, i32, i32, i32) {
    %c0_i32 = arith.constant 0 : i32
    %c0_i32_0 = arith.constant 0 : i32
    %c0_i32_1 = arith.constant 0 : i32
    %c0_i32_2 = arith.constant 0 : i32
    %c0_i32_3 = arith.constant 0 : i32
    return %c0_i32, %c0_i32_0, %c0_i32_1, %c0_i32_2 : i32, i32, i32, i32
  }
  func.func @transform_2(%arg0: i32) -> (i32, i32, i32) {
    %c0_i32 = arith.constant 0 : i32
    %c0_i32_0 = arith.constant 0 : i32
    %c0_i32_1 = arith.constant 0 : i32
    %c0_i32_2 = arith.constant 0 : i32
    return %c0_i32, %c0_i32_0, %c0_i32_1 : i32, i32, i32
  }
  func.func @transform_3(%arg0: i32) -> (i32, i32, i32) {
    %c0_i32 = arith.constant 0 : i32
    %c0_i32_0 = arith.constant 0 : i32
    %c0_i32_1 = arith.constant 0 : i32
    %c0_i32_2 = arith.constant 0 : i32
    return %c0_i32, %c0_i32_0, %c0_i32_1 : i32, i32, i32
  }
  func.func @transform_4(%arg0: i32) -> (i32, i32, i32) {
    %c0_i32 = arith.constant 0 : i32
    %c0_i32_0 = arith.constant 0 : i32
    %c0_i32_1 = arith.constant 0 : i32
    %c0_i32_2 = arith.constant 0 : i32
    return %c0_i32, %c0_i32_0, %c0_i32_1 : i32, i32, i32
  }
  func.func @transform_5(%arg0: i32) -> (i32, i32) {
    %c0_i32 = arith.constant 0 : i32
    %c0_i32_0 = arith.constant 0 : i32
    %c0_i32_1 = arith.constant 0 : i32
    return %c0_i32, %c0_i32_0 : i32, i32
  }
  func.func @transform_6(%arg0: i32) -> (i32, i32) {
    %c0_i32 = arith.constant 0 : i32
    %c0_i32_0 = arith.constant 0 : i32
    %c0_i32_1 = arith.constant 0 : i32
    return %c0_i32, %c0_i32_0 : i32, i32
  }
  func.func @transform_7(%arg0: i32) -> (i32, i32) {
    %c0_i32 = arith.constant 0 : i32
    %c0_i32_0 = arith.constant 0 : i32
    %c0_i32_1 = arith.constant 0 : i32
    return %c0_i32, %c0_i32_0 : i32, i32
  }
  func.func @transform_8(%arg0: i32) -> (i32, i32) {
    %c0_i32 = arith.constant 0 : i32
    %c0_i32_0 = arith.constant 0 : i32
    %c0_i32_1 = arith.constant 0 : i32
    return %c0_i32, %c0_i32_0 : i32, i32
  }
  func.func @transform_9(%arg0: i32) -> (i32, i32, i32) {
    %c0_i32 = arith.constant 0 : i32
    %c0_i32_0 = arith.constant 0 : i32
    %c0_i32_1 = arith.constant 0 : i32
    return %arg0, %c0_i32, %c0_i32_0 : i32, i32, i32
  }
}

</mosaic_0001>

<llo_original>
// kernel: net_forward.1
$region0: #{net_forward.1}
  #allocation0 [shape = 'u32[]', space=smem, size = 0x4, offset = 0x4, fixed_abs, tag = 'smem constant byte address 0x4 - core index']
  #allocation1 [shape = 'u32[72,128]{1,0:T(1,128)}', space=vmem, size = 0x9000, scoped, tag = 'internal scratch']
  #allocation2 [shape = 'f32[14,112]{1,0:T(8,128)}', space=vmem, size = 0x2000, scoped, tag = 'scratch operand']
  #allocation3 [shape = 'f32[5,80]{1,0:T(8,128)}', space=vmem, size = 0x1000, scoped, tag = 'scratch operand']
  %s0 = inlined_call_operand.vmem [shape: f32[2,32,96], index: 0, kind: input, shape index: {}]
  %s1 = inlined_call_operand.vmem [shape: bf16[2,5,96,112], index: 1, kind: input, shape index: {}]
  %s2 = inlined_call_operand.vmem [shape: bf16[5,112,80], index: 2, kind: input, shape index: {}]
  %s3 = inlined_call_operand.vmem [shape: bf16[2,80,80], index: 3, kind: input, shape index: {}]
  %s4 = inlined_call_operand.vmem [shape: bf16[5,80,10], index: 4, kind: input, shape index: {}]
  %s5 = inlined_call_operand.vmem [shape: f32[2,112], index: 5, kind: input, shape index: {}]
  %s6 = inlined_call_operand.vmem [shape: f32[2,80], index: 6, kind: input, shape index: {}]
  %s7 = inlined_call_operand.vmem [shape: f32[2,80], index: 7, kind: input, shape index: {}]
  %s8 = inlined_call_operand.vmem [shape: f32[1,10], index: 8, kind: input, shape index: {}]
  %s9 = inlined_call_operand.hbm [shape: f32[2,1,10], index: 9, kind: output, shape index: {}]
  %s10 = sld [smem:[#allocation0]]
  $region69: #{net_forward.1} parent=0
    _
  %s12 = ssub.s32 1, %s10
  %s13 = scalar_select 0, %s12, %s10
  $region1: #{net_forward.1} parent=0
    #allocation4 [shape = 'u8[1024]{0}', space=vmem, size = 0x400, scoped, tag = 'output window, operand 0']
    #allocation5 [shape = 's32[2]{0}', space=sflag, size = 0x8, scoped, tag = 'scoped memory for net_forward.1']
    %14 = vsyncpa [#allocation5], 0
    %s15 = scalar_lea.sflag [#allocation5], 1
    %16 = vsyncpa %s15, 0
    loop: start=0, step=1, limit=4
    $region2: #{net_forward.1} parent=1 // loop_pre_header
      _
    $region3: #{net_forward.1} parent=1 // loop_header
      %s18 = sphi 0, %s22
      %p19 = scmp.ge.s32.totalorder %s18, 4
      %s28 = sphi 0, %s30
      %s31 = sphi 0, %s28
      %s32 = sphi 0, %s31
      %s48 = sphi 0, %s32
      %s52 = sphi 0, %s52
      %s54 = sphi 0, %s52
      %s55 = sphi 0, %s54
      %s69 = sphi 0, %s55
      %s73 = sphi 0, %s73
      %s75 = sphi 0, %s73
      %s76 = sphi 0, %s75
      %s90 = sphi 0, %s76
      %s94 = sphi 0, %s94
      %s96 = sphi 0, %s94
      %s97 = sphi 0, %s96
      %s111 = sphi 0, %s97
      %s115 = sphi 0, %s115
      %s117 = sphi 0, %s115
      %s118 = sphi 0, %s117
      %s132 = sphi 0, %s118
      %s136 = sphi 0, %s136
      %s138 = sphi 0, %s136
      %s139 = sphi 0, %s138
      %s153 = sphi 0, %s139
      %s157 = sphi 0, %s157
      %s159 = sphi 0, %s157
      %s160 = sphi 0, %s159
      %s174 = sphi 0, %s160
      %s178 = sphi 0, %s178
      %s180 = sphi 0, %s178
      %s181 = sphi 0, %s180
      %s195 = sphi 0, %s181
      %s199 = sphi 0, %s199
      %s201 = sphi 0, %s199
      %s202 = sphi 0, %s201
      %s216 = sphi 0, %s202
      %s222 = sphi 0, %s224
      %s225 = sphi 0, %s222
      %s226 = sphi 0, %s225
      %s242 = sphi 0, %s226
    $region4: #{net_forward.1} parent=1 // loop_header_branch
      %21 = sbr.rel (%p19) target = $region8
    $region5: #{net_forward.1} parent=1 // loop_body
      %s23 = ssub.s32 %s18, 1
      %s24 = ssub.s32 %s18, 2
      %s25 = sadd.s32 %s18, 1
      %s26 = ssub.s32 %s18, %s25
      %p27 = scmp.eq.s32.totalorder %s26, 0
      %s29 = sadd.s32 %s28, 1
      %s30 = scalar_select %p27, %s28, %s29
      %p33 = pneg %p27
      %p34 = scmp.eq.s32.totalorder %s18, 1
      %p35 = por %p33, %p34
      %p36 = scmp.ne.s32.totalorder %s28, %s31
      %p37 = scmp.eq.s32.totalorder %s18, 0
      %p38 = por %p36, %p37
      %p39 = scmp.ne.s32.totalorder %s28, %s31
      %p40 = scmp.eq.s32.totalorder %s23, 1
      %p41 = por %p39, %p40
      %p42 = scmp.ne.s32.totalorder %s31, %s32
      %p43 = scmp.eq.s32.totalorder %s23, 0
      %p44 = por %p42, %p43
      %p45 = scmp.ne.s32.totalorder %s31, %s32
      %p46 = scmp.eq.s32.totalorder %s24, 1
      %p47 = por %p45, %p46
      %p49 = scmp.ne.s32.totalorder %s32, %s48
      %p50 = scmp.eq.s32.totalorder %s24, 0
      %p51 = por %p49, %p50
      %s53 = sadd.s32 %s52, 1
      %p56 = scmp.eq.s32.totalorder %s18, 1
      %p57 = scmp.ne.s32.totalorder %s52, %s54
      %p58 = scmp.eq.s32.totalorder %s18, 0
      %p59 = por %p57, %p58
      %p60 = scmp.ne.s32.totalorder %s52, %s54
      %p61 = scmp.eq.s32.totalorder %s23, 1
      %p62 = por %p60, %p61
      %p63 = scmp.ne.s32.totalorder %s54, %s55
      %p64 = scmp.eq.s32.totalorder %s23, 0
      %p65 = por %p63, %p64
      %p66 = scmp.ne.s32.totalorder %s54, %s55
      %p67 = scmp.eq.s32.totalorder %s24, 1
      %p68 = por %p66, %p67
      %p70 = scmp.ne.s32.totalorder %s55, %s69
      %p71 = scmp.eq.s32.totalorder %s24, 0
      %p72 = por %p70, %p71
      %s74 = sadd.s32 %s73, 1
      %p77 = scmp.eq.s32.totalorder %s18, 1
      %p78 = scmp.ne.s32.totalorder %s73, %s75
      %p79 = scmp.eq.s32.totalorder %s18, 0
      %p80 = por %p78, %p79
      %p81 = scmp.ne.s32.totalorder %s73, %s75
      %p82 = scmp.eq.s32.totalorder %s23, 1
      %p83 = por %p81, %p82
      %p84 = scmp.ne.s32.totalorder %s75, %s76
      %p85 = scmp.eq.s32.totalorder %s23, 0
      %p86 = por %p84, %p85
      %p87 = scmp.ne.s32.totalorder %s75, %s76
      %p88 = scmp.eq.s32.totalorder %s24, 1
      %p89 = por %p87, %p88
      %p91 = scmp.ne.s32.totalorder %s76, %s90
      %p92 = scmp.eq.s32.totalorder %s24, 0
      %p93 = por %p91, %p92
      %s95 = sadd.s32 %s94, 1
      %p98 = scmp.eq.s32.totalorder %s18, 1
      %p99 = scmp.ne.s32.totalorder %s94, %s96
      %p100 = scmp.eq.s32.totalorder %s18, 0
      %p101 = por %p99, %p100
      %p102 = scmp.ne.s32.totalorder %s94, %s96
      %p103 = scmp.eq.s32.totalorder %s23, 1
      %p104 = por %p102, %p103
      %p105 = scmp.ne.s32.totalorder %s96, %s97
      %p106 = scmp.eq.s32.totalorder %s23, 0
      %p107 = por %p105, %p106
      %p108 = scmp.ne.s32.totalorder %s96, %s97
      %p109 = scmp.eq.s32.totalorder %s24, 1
      %p110 = por %p108, %p109
      %p112 = scmp.ne.s32.totalorder %s97, %s111
      %p113 = scmp.eq.s32.totalorder %s24, 0
      %p114 = por %p112, %p113
      %s116 = sadd.s32 %s115, 1
      %p119 = scmp.eq.s32.totalorder %s18, 1
      %p120 = scmp.ne.s32.totalorder %s115, %s117
      %p121 = scmp.eq.s32.totalorder %s18, 0
      %p122 = por %p120, %p121
      %p123 = scmp.ne.s32.totalorder %s115, %s117
      %p124 = scmp.eq.s32.totalorder %s23, 1
      %p125 = por %p123, %p124
      %p126 = scmp.ne.s32.totalorder %s117, %s118
      %p127 = scmp.eq.s32.totalorder %s23, 0
      %p128 = por %p126, %p127
      %p129 = scmp.ne.s32.totalorder %s117, %s118
      %p130 = scmp.eq.s32.totalorder %s24, 1
      %p131 = por %p129, %p130
      %p133 = scmp.ne.s32.totalorder %s118, %s132
      %p134 = scmp.eq.s32.totalorder %s24, 0
      %p135 = por %p133, %p134
      %s137 = sadd.s32 %s136, 1
      %p140 = scmp.eq.s32.totalorder %s18, 1
      %p141 = scmp.ne.s32.totalorder %s136, %s138
      %p142 = scmp.eq.s32.totalorder %s18, 0
      %p143 = por %p141, %p142
      %p144 = scmp.ne.s32.totalorder %s136, %s138
      %p145 = scmp.eq.s32.totalorder %s23, 1
      %p146 = por %p144, %p145
      %p147 = scmp.ne.s32.totalorder %s138, %s139
      %p148 = scmp.eq.s32.totalorder %s23, 0
      %p149 = por %p147, %p148
      %p150 = scmp.ne.s32.totalorder %s138, %s139
      %p151 = scmp.eq.s32.totalorder %s24, 1
      %p152 = por %p150, %p151
      %p154 = scmp.ne.s32.totalorder %s139, %s153
      %p155 = scmp.eq.s32.totalorder %s24, 0
      %p156 = por %p154, %p155
      %s158 = sadd.s32 %s157, 1
      %p161 = scmp.eq.s32.totalorder %s18, 1
      %p162 = scmp.ne.s32.totalorder %s157, %s159
      %p163 = scmp.eq.s32.totalorder %s18, 0
      %p164 = por %p162, %p163
      %p165 = scmp.ne.s32.totalorder %s157, %s159
      %p166 = scmp.eq.s32.totalorder %s23, 1
      %p167 = por %p165, %p166
      %p168 = scmp.ne.s32.totalorder %s159, %s160
      %p169 = scmp.eq.s32.totalorder %s23, 0
      %p170 = por %p168, %p169
      %p171 = scmp.ne.s32.totalorder %s159, %s160
      %p172 = scmp.eq.s32.totalorder %s24, 1
      %p173 = por %p171, %p172
      %p175 = scmp.ne.s32.totalorder %s160, %s174
      %p176 = scmp.eq.s32.totalorder %s24, 0
      %p177 = por %p175, %p176
      %s179 = sadd.s32 %s178, 1
      %p182 = scmp.eq.s32.totalorder %s18, 1
      %p183 = scmp.ne.s32.totalorder %s178, %s180
      %p184 = scmp.eq.s32.totalorder %s18, 0
      %p185 = por %p183, %p184
      %p186 = scmp.ne.s32.totalorder %s178, %s180
      %p187 = scmp.eq.s32.totalorder %s23, 1
      %p188 = por %p186, %p187
      %p189 = scmp.ne.s32.totalorder %s180, %s181
      %p190 = scmp.eq.s32.totalorder %s23, 0
      %p191 = por %p189, %p190
      %p192 = scmp.ne.s32.totalorder %s180, %s181
      %p193 = scmp.eq.s32.totalorder %s24, 1
      %p194 = por %p192, %p193
      %p196 = scmp.ne.s32.totalorder %s181, %s195
      %p197 = scmp.eq.s32.totalorder %s24, 0
      %p198 = por %p196, %p197
      %s200 = sadd.s32 %s199, 1
      %p203 = scmp.eq.s32.totalorder %s18, 1
      %p204 = scmp.ne.s32.totalorder %s199, %s201
      %p205 = scmp.eq.s32.totalorder %s18, 0
      %p206 = por %p204, %p205
      %p207 = scmp.ne.s32.totalorder %s199, %s201
      %p208 = scmp.eq.s32.totalorder %s23, 1
      %p209 = por %p207, %p208
      %p210 = scmp.ne.s32.totalorder %s201, %s202
      %p211 = scmp.eq.s32.totalorder %s23, 0
      %p212 = por %p210, %p211
      %p213 = scmp.ne.s32.totalorder %s201, %s202
      %p214 = scmp.eq.s32.totalorder %s24, 1
      %p215 = por %p213, %p214
      %p217 = scmp.ne.s32.totalorder %s202, %s216
      %p218 = scmp.eq.s32.totalorder %s24, 0
      %p219 = por %p217, %p218
      %s220 = ssub.s32 %s18, %s25
      %p221 = scmp.eq.s32.totalorder %s220, 0
      %s223 = sadd.s32 %s222, 1
      %s224 = scalar_select %p221, %s222, %s223
      %p227 = pneg %p221
      %p228 = scmp.eq.s32.totalorder %s18, 1
      %p229 = por %p227, %p228
      %p230 = scmp.ne.s32.totalorder %s222, %s225
      %p231 = scmp.eq.s32.totalorder %s18, 0
      %p232 = por %p230, %p231
      %p233 = scmp.ne.s32.totalorder %s222, %s225
      %p234 = scmp.eq.s32.totalorder %s23, 1
      %p235 = por %p233, %p234
      %p236 = scmp.ne.s32.totalorder %s225, %s226
      %p237 = scmp.eq.s32.totalorder %s23, 0
      %p238 = por %p236, %p237
      %p239 = scmp.ne.s32.totalorder %s225, %s226
      %p240 = scmp.eq.s32.totalorder %s24, 1
      %p241 = por %p239, %p240
      %p243 = scmp.ne.s32.totalorder %s226, %s242
      %p244 = scmp.eq.s32.totalorder %s24, 0
      %p245 = por %p243, %p244
      %p246 = scmp.le.s32.totalorder 1, %s18
      %p247 = scmp.lt.s32.totalorder %s18, 3
      %p248 = pnand %p246, %p247
      %p249 = pneg %p248
      // Predicated region
      $region9: #{net_forward.1} parent=5 // pred_check
        _
      $region10: #{net_forward.1} parent=5 // pred_check_branch
        %251 = sbr.rel (%p248) target = $region12
      $region11: #{net_forward.1} parent=5 // pred_region
        %s252 = ssub.s32 %s18, 1
        // Predicated region
        $region13: #{net_forward.1} parent=11 // pred_check
          %p253 = pneg %p65
        $region14: #{net_forward.1} parent=11 // pred_check_branch
          %255 = sbr.rel (%p253) target = $region16
        $region15: #{net_forward.1} parent=11 // pred_region
          _
        $region16: #{net_forward.1} parent=11 // pred_fallthru
          _
        // Predicated region
        $region17: #{net_forward.1} parent=11 // pred_check
          %p256 = pneg %p86
        $region18: #{net_forward.1} parent=11 // pred_check_branch
          %258 = sbr.rel (%p256) target = $region20
        $region19: #{net_forward.1} parent=11 // pred_region
          _
        $region20: #{net_forward.1} parent=11 // pred_fallthru
          _
        // Predicated region
        $region21: #{net_forward.1} parent=11 // pred_check
          %p259 = pneg %p107
        $region22: #{net_forward.1} parent=11 // pred_check_branch
          %261 = sbr.rel (%p259) target = $region24
        $region23: #{net_forward.1} parent=11 // pred_region
          _
        $region24: #{net_forward.1} parent=11 // pred_fallthru
          _
        // Predicated region
        $region25: #{net_forward.1} parent=11 // pred_check
          %p262 = pneg %p128
        $region26: #{net_forward.1} parent=11 // pred_check_branch
          %264 = sbr.rel (%p262) target = $region28
        $region27: #{net_forward.1} parent=11 // pred_region
          _
        $region28: #{net_forward.1} parent=11 // pred_fallthru
          _
        // Predicated region
        $region29: #{net_forward.1} parent=11 // pred_check
          %p265 = pneg %p149
        $region30: #{net_forward.1} parent=11 // pred_check_branch
          %267 = sbr.rel (%p265) target = $region32
        $region31: #{net_forward.1} parent=11 // pred_region
          _
        $region32: #{net_forward.1} parent=11 // pred_fallthru
          _
        // Predicated region
        $region33: #{net_forward.1} parent=11 // pred_check
          %p268 = pneg %p170
        $region34: #{net_forward.1} parent=11 // pred_check_branch
          %270 = sbr.rel (%p268) target = $region36
        $region35: #{net_forward.1} parent=11 // pred_region
          _
        $region36: #{net_forward.1} parent=11 // pred_fallthru
          _
        // Predicated region
        $region37: #{net_forward.1} parent=11 // pred_check
          %p271 = pneg %p191
        $region38: #{net_forward.1} parent=11 // pred_check_branch
          %273 = sbr.rel (%p271) target = $region40
        $region39: #{net_forward.1} parent=11 // pred_region
          _
        $region40: #{net_forward.1} parent=11 // pred_fallthru
          _
        // Predicated region
        $region41: #{net_forward.1} parent=11 // pred_check
          %p274 = pneg %p212
        $region42: #{net_forward.1} parent=11 // pred_check_branch
          %276 = sbr.rel (%p274) target = $region44
        $region43: #{net_forward.1} parent=11 // pred_region
          _
        $region44: #{net_forward.1} parent=11 // pred_fallthru
          _
      $region12: #{net_forward.1} parent=5 // pred_fallthru
        _
      %p277 = scmp.lt.s32.totalorder %s18, 2
      // Predicated region
      $region45: #{net_forward.1} parent=5 // pred_check
        %p278 = pneg %p277
      $region46: #{net_forward.1} parent=5 // pred_check_branch
        %280 = sbr.rel (%p278) target = $region48
      $region47: #{net_forward.1} parent=5 // pred_region
        // Predicated region
        $region49: #{net_forward.1} parent=47 // pred_check
          %p281 = pneg %p38
        $region50: #{net_forward.1} parent=47 // pred_check_branch
          %283 = sbr.rel (%p281) target = $region52
        $region51: #{net_forward.1} parent=47 // pred_region
          %p284 = scmp.lt.s32.totalorder %s18, 1
          %s285 = scalar_select %p284, %s18, 1
          %s286 = smul.addr %s285, 4
          %s287 = smul.addr %s286, 8
          %s288 = scalar_lea.vmem %s0, %s287
        $region52: #{net_forward.1} parent=47 // pred_fallthru
          _
      $region48: #{net_forward.1} parent=5 // pred_fallthru
        _
      %p289 = scmp.le.s32.totalorder 1, %s18
      %p290 = scmp.lt.s32.totalorder %s18, 3
      %p291 = pnand %p289, %p290
      %p292 = pneg %p291
      // Predicated region
      $region53: #{net_forward.1} parent=5 // pred_check
        _
      $region54: #{net_forward.1} parent=5 // pred_check_branch
        %294 = sbr.rel (%p291) target = $region56
      $region55: #{net_forward.1} parent=5 // pred_region
        %s295 = ssub.s32 %s18, 1
        %p296 = scmp.lt.s32.totalorder %s23, 1
        %s297 = scalar_select %p296, %s23, 1
        %s298 = smul.addr %s297, 4
        %s299 = smul.addr %s298, 8
        %s300 = scalar_lea.vmem %s0, %s299
        %p301 = pneg %p44
        %p302 = pneg %p41
        %p303 = pneg %p65
        %p304 = pneg %p62
        %p305 = pneg %p86
        %p306 = pneg %p83
        %p307 = pneg %p107
        %p308 = pneg %p104
        %p309 = pneg %p128
        %p310 = pneg %p125
        %p311 = pneg %p149
        %p312 = pneg %p146
        %p313 = pneg %p170
        %p314 = pneg %p167
        %p315 = pneg %p191
        %p316 = pneg %p188
        %p317 = pneg %p212
        %p318 = pneg %p209
        %p319 = pneg %p238
        %p320 = pneg %p235
        %s321 = sand.u32 %s225, 1
        %s322 = scalar_lea.sflag [#allocation5], %s321
        %s323 = sand.u32 %s225, 1
        %s324 = scalar_lea.vmem [#allocation4], %s323
        %p325 = scmp.lt.s32.totalorder %s23, 1
        %s326 = scalar_select %p325, %s23, 1
        %s327 = smul.addr %s326, 4
        %s328 = smul.addr %s327, 8
        %s329 = scalar_lea.vmem %s0, %s328
        %v331 = vld [vmem:[%s329] sm:$0xff]
        %v332 = vld [vmem:[%s329 + $0x8] sm:$0xff]
        %v333 = vld [vmem:[%s329 + $0x10] sm:$0xff]
        %v334 = vld [vmem:[%s329 + $0x18] sm:$0xff]
        %v335 = vpack.c.bf16 %v332, %v331
        %v336 = vpack.c.bf16 %v334, %v333
        %v337 = vld [vmem:[%s1] sm:$0xf]
        %v338 = vld [vmem:[%s1 + $0x4] sm:$0xf]
        %v339 = vld [vmem:[%s1 + $0x8] sm:$0xf]
        %v340 = vld [vmem:[%s1 + $0xc] sm:$0xf]
        %v341 = vld [vmem:[%s1 + $0x10] sm:$0xf]
        %v342 = vld [vmem:[%s1 + $0x14] sm:$0xf]
        %v343 = vld [vmem:[%s1 + $0x18] sm:$0xf]
        %v344 = vld [vmem:[%s1 + $0x1c] sm:$0xf]
        %v345 = vld [vmem:[%s1 + $0x20] sm:$0xf]
        %v346 = vld [vmem:[%s1 + $0x24] sm:$0xf]
        %v347 = vld [vmem:[%s1 + $0x28] sm:$0xf]
        %v348 = vld [vmem:[%s1 + $0x2c] sm:$0xf]
        %s349 = scalar_lea.vmem %s1, 240
        %v350 = vld [vmem:[%s349] sm:$0xf]
        %v351 = vld [vmem:[%s349 + $0x4] sm:$0xf]
        %v352 = vld [vmem:[%s349 + $0x8] sm:$0xf]
        %v353 = vld [vmem:[%s349 + $0xc] sm:$0xf]
        %v354 = vld [vmem:[%s349 + $0x10] sm:$0xf]
        %v355 = vld [vmem:[%s349 + $0x14] sm:$0xf]
        %v356 = vld [vmem:[%s349 + $0x18] sm:$0xf]
        %v357 = vld [vmem:[%s349 + $0x1c] sm:$0xf]
        %v358 = vld [vmem:[%s349 + $0x20] sm:$0xf]
        %v359 = vld [vmem:[%s349 + $0x24] sm:$0xf]
        %v360 = vld [vmem:[%s349 + $0x28] sm:$0xf]
        %v361 = vld [vmem:[%s349 + $0x2c] sm:$0xf]
        %s362 = scalar_lea.vmem %s1, 48
        %v363 = vld [vmem:[%s362] sm:$0xf]
        %v364 = vld [vmem:[%s362 + $0x4] sm:$0xf]
        %v365 = vld [vmem:[%s362 + $0x8] sm:$0xf]
        %v366 = vld [vmem:[%s362 + $0xc] sm:$0xf]
        %v367 = vld [vmem:[%s362 + $0x10] sm:$0xf]
        %v368 = vld [vmem:[%s362 + $0x14] sm:$0xf]
        %v369 = vld [vmem:[%s362 + $0x18] sm:$0xf]
        %v370 = vld [vmem:[%s362 + $0x1c] sm:$0xf]
        %v371 = vld [vmem:[%s362 + $0x20] sm:$0xf]
        %v372 = vld [vmem:[%s362 + $0x24] sm:$0xf]
        %v373 = vld [vmem:[%s362 + $0x28] sm:$0xf]
        %v374 = vld [vmem:[%s362 + $0x2c] sm:$0xf]
        %vm375 = vsmask.f32 7424
        %v377 = vshrl.u32 %v335, 16
        %v379 = vshll.u32 %v335, 16
        %v381 = vrot.slane %v379, 1
        %v382 = vor.u32 %v377, %v381
        %v384 = vshll.u32 %v336, 16
        %v386 = vrot.slane %v384, 1
        %v387 = vsel %vm375, %v382, %v386
        %v388 = vshrl.u32 %v336, 16
        %v390 = vor.u32 %v388, %v386
        %v403 = vunpack.c.l.b16 %v363
        %v404 = vunpack.c.l.b16 %v364
        %v405 = vunpack.c.l.b16 %v365
        %v406 = vunpack.c.l.b16 %v366
        %v407 = vunpack.c.l.b16 %v367
        %v408 = vunpack.c.l.b16 %v368
        %v409 = vunpack.c.l.b16 %v369
        %v410 = vunpack.c.l.b16 %v370
        %v411 = vunpack.c.l.b16 %v371
        %v412 = vunpack.c.l.b16 %v372
        %v413 = vunpack.c.l.b16 %v373
        %v414 = vunpack.c.l.b16 %v374
        %v415 = vpack.c.b16 %v404, %v403
        %v416 = vpack.c.b16 %v406, %v405
        %v417 = vpack.c.b16 %v408, %v407
        %v418 = vpack.c.b16 %v410, %v409
        %v419 = vpack.c.b16 %v412, %v411
        %v420 = vpack.c.b16 %v414, %v413
        %vm427 = vcmask 785408
        %v429 = vsel %vm427, %v387, 0
        %v432 = vsel %vm427, %v390, 0
        %434 = vmatpush.bf16.msra.mxu0 0
        %435 = vmatpush.bf16.msra.mxu0 0
        %436 = vmatpush.bf16.msra.mxu0 %v420
        %437 = vmatpush.bf16.msra.mxu0 %v419
        %438 = vmatpush.bf16.msra.mxu0 %v418
        %439 = vmatpush.bf16.msra.mxu0 %v417
        %440 = vmatpush.bf16.msra.mxu0 %v416
        %441 = vmatpush.bf16.msra.mxu0 %v415
        %442 = vmatmul.bf16.gmra.mxu0 %v429
        %v443 = vpop.f32.mrf.mxu0
        %v444 = vadd.f32 0.0, %v443
        %v445 = vpop.f32.mrf.mxu0
        %v446 = vadd.f32 0.0, %v445
        %447 = vmatmul.bf16.gmra.mxu0 %v432
        %v448 = vpop.f32.mrf.mxu0
        %v449 = vadd.f32 0.0, %v448
        %v450 = vpop.f32.mrf.mxu0
        %v451 = vadd.f32 0.0, %v450
        %452 = vdwg.mxu0
        %v465 = vunpack.c.l.b16 %v337
        %v466 = vunpack.c.l.b16 %v338
        %v467 = vunpack.c.l.b16 %v339
        %v468 = vunpack.c.l.b16 %v340
        %v469 = vunpack.c.l.b16 %v341
        %v470 = vunpack.c.l.b16 %v342
        %v471 = vunpack.c.l.b16 %v343
        %v472 = vunpack.c.l.b16 %v344
        %v473 = vunpack.c.l.b16 %v345
        %v474 = vunpack.c.l.b16 %v346
        %v475 = vunpack.c.l.b16 %v347
        %v476 = vunpack.c.l.b16 %v348
        %v477 = vpack.c.b16 %v466, %v465
        %v478 = vpack.c.b16 %v468, %v467
        %v479 = vpack.c.b16 %v470, %v469
        %v480 = vpack.c.b16 %v472, %v471
        %v481 = vpack.c.b16 %v474, %v473
        %v482 = vpack.c.b16 %v476, %v475
        %v489 = vsel %vm427, %v335, 0
        %v491 = vsel %vm427, %v336, 0
        %493 = vmatpush.bf16.msra.mxu0 0
        %494 = vmatpush.bf16.msra.mxu0 0
        %495 = vmatpush.bf16.msra.mxu0 %v482
        %496 = vmatpush.bf16.msra.mxu0 %v481
        %497 = vmatpush.bf16.msra.mxu0 %v480
        %498 = vmatpush.bf16.msra.mxu0 %v479
        %499 = vmatpush.bf16.msra.mxu0 %v478
        %500 = vmatpush.bf16.msra.mxu0 %v477
        %501 = vmatmul.bf16.gmra.mxu0 %v489
        %v502 = vpop.f32.mrf.mxu0
        %v503 = vadd.f32 %v444, %v502
        %v504 = vpop.f32.mrf.mxu0
        %v505 = vadd.f32 %v446, %v504
        %506 = vmatmul.bf16.gmra.mxu0 %v491
        %v507 = vpop.f32.mrf.mxu0
        %v508 = vadd.f32 %v449, %v507
        %v509 = vpop.f32.mrf.mxu0
        %v510 = vadd.f32 %v451, %v509
        %511 = vdwg.mxu0
        %s512 = scalar_lea.vmem %s1, 288
        %v513 = vld [vmem:[%s512] sm:$0xf]
        %v514 = vld [vmem:[%s512 + $0x4] sm:$0xf]
        %v515 = vld [vmem:[%s512 + $0x8] sm:$0xf]
        %v516 = vld [vmem:[%s512 + $0xc] sm:$0xf]
        %v517 = vld [vmem:[%s512 + $0x10] sm:$0xf]
        %v518 = vld [vmem:[%s512 + $0x14] sm:$0xf]
        %v519 = vld [vmem:[%s512 + $0x18] sm:$0xf]
        %v520 = vld [vmem:[%s512 + $0x1c] sm:$0xf]
        %v521 = vld [vmem:[%s512 + $0x20] sm:$0xf]
        %v522 = vld [vmem:[%s512 + $0x24] sm:$0xf]
        %v523 = vld [vmem:[%s512 + $0x28] sm:$0xf]
        %v524 = vld [vmem:[%s512 + $0x2c] sm:$0xf]
        %v537 = vunpack.c.l.b16 %v513
        %v538 = vunpack.c.l.b16 %v514
        %v539 = vunpack.c.l.b16 %v515
        %v540 = vunpack.c.l.b16 %v516
        %v541 = vunpack.c.l.b16 %v517
        %v542 = vunpack.c.l.b16 %v518
        %v543 = vunpack.c.l.b16 %v519
        %v544 = vunpack.c.l.b16 %v520
        %v545 = vunpack.c.l.b16 %v521
        %v546 = vunpack.c.l.b16 %v522
        %v547 = vunpack.c.l.b16 %v523
        %v548 = vunpack.c.l.b16 %v524
        %v549 = vpack.c.b16 %v538, %v537
        %v550 = vpack.c.b16 %v540, %v539
        %v551 = vpack.c.b16 %v542, %v541
        %v552 = vpack.c.b16 %v544, %v543
        %v553 = vpack.c.b16 %v546, %v545
        %v554 = vpack.c.b16 %v548, %v547
        %561 = vmatpush.bf16.msra.mxu0 0
        %562 = vmatpush.bf16.msra.mxu0 0
        %563 = vmatpush.bf16.msra.mxu0 %v554
        %564 = vmatpush.bf16.msra.mxu0 %v553
        %565 = vmatpush.bf16.msra.mxu0 %v552
        %566 = vmatpush.bf16.msra.mxu0 %v551
        %567 = vmatpush.bf16.msra.mxu0 %v550
        %568 = vmatpush.bf16.msra.mxu0 %v549
        %569 = vmatmul.bf16.gmra.mxu0 %v429
        %v570 = vpop.f32.mrf.mxu0
        %v571 = vadd.f32 0.0, %v570
        %v572 = vpop.f32.mrf.mxu0
        %v573 = vadd.f32 0.0, %v572
        %574 = vmatmul.bf16.gmra.mxu0 %v432
        %v575 = vpop.f32.mrf.mxu0
        %v576 = vadd.f32 0.0, %v575
        %v577 = vpop.f32.mrf.mxu0
        %v578 = vadd.f32 0.0, %v577
        %579 = vdwg.mxu0
        %v592 = vunpack.c.l.b16 %v350
        %v593 = vunpack.c.l.b16 %v351
        %v594 = vunpack.c.l.b16 %v352
        %v595 = vunpack.c.l.b16 %v353
        %v596 = vunpack.c.l.b16 %v354
        %v597 = vunpack.c.l.b16 %v355
        %v598 = vunpack.c.l.b16 %v356
        %v599 = vunpack.c.l.b16 %v357
        %v600 = vunpack.c.l.b16 %v358
        %v601 = vunpack.c.l.b16 %v359
        %v602 = vunpack.c.l.b16 %v360
        %v603 = vunpack.c.l.b16 %v361
        %v604 = vpack.c.b16 %v593, %v592
        %v605 = vpack.c.b16 %v595, %v594
        %v606 = vpack.c.b16 %v597, %v596
        %v607 = vpack.c.b16 %v599, %v598
        %v608 = vpack.c.b16 %v601, %v600
        %v609 = vpack.c.b16 %v603, %v602
        %616 = vmatpush.bf16.msra.mxu0 0
        %617 = vmatpush.bf16.msra.mxu0 0
        %618 = vmatpush.bf16.msra.mxu0 %v609
        %619 = vmatpush.bf16.msra.mxu0 %v608
        %620 = vmatpush.bf16.msra.mxu0 %v607
        %621 = vmatpush.bf16.msra.mxu0 %v606
        %622 = vmatpush.bf16.msra.mxu0 %v605
        %623 = vmatpush.bf16.msra.mxu0 %v604
        %624 = vmatmul.bf16.gmra.mxu0 %v489
        %v625 = vpop.f32.mrf.mxu0
        %v626 = vadd.f32 %v571, %v625
        %v627 = vpop.f32.mrf.mxu0
        %v628 = vadd.f32 %v573, %v627
        %629 = vmatmul.bf16.gmra.mxu0 %v491
        %v630 = vpop.f32.mrf.mxu0
        %v631 = vadd.f32 %v576, %v630
        %v632 = vpop.f32.mrf.mxu0
        %v633 = vadd.f32 %v578, %v632
        %634 = vdwg.mxu0
        %s635 = scalar_lea.vmem %s1, 96
        %v636 = vld [vmem:[%s635] sm:$0xf]
        %v637 = vld [vmem:[%s635 + $0x4] sm:$0xf]
        %v638 = vld [vmem:[%s635 + $0x8] sm:$0xf]
        %v639 = vld [vmem:[%s635 + $0xc] sm:$0xf]
        %v640 = vld [vmem:[%s635 + $0x10] sm:$0xf]
        %v641 = vld [vmem:[%s635 + $0x14] sm:$0xf]
        %v642 = vld [vmem:[%s635 + $0x18] sm:$0xf]
        %v643 = vld [vmem:[%s635 + $0x1c] sm:$0xf]
        %v644 = vld [vmem:[%s635 + $0x20] sm:$0xf]
        %v645 = vld [vmem:[%s635 + $0x24] sm:$0xf]
        %v646 = vld [vmem:[%s635 + $0x28] sm:$0xf]
        %v647 = vld [vmem:[%s635 + $0x2c] sm:$0xf]
        %vm650 = vcmask 1046528
        %v651 = vrot.slane %v335, 1
        %v652 = vrot.slane %v336, 1
        %v653 = vsel %vm650, %v651, %v652
        %v666 = vunpack.c.l.b16 %v636
        %v667 = vunpack.c.l.b16 %v637
        %v668 = vunpack.c.l.b16 %v638
        %v669 = vunpack.c.l.b16 %v639
        %v670 = vunpack.c.l.b16 %v640
        %v671 = vunpack.c.l.b16 %v641
        %v672 = vunpack.c.l.b16 %v642
        %v673 = vunpack.c.l.b16 %v643
        %v674 = vunpack.c.l.b16 %v644
        %v675 = vunpack.c.l.b16 %v645
        %v676 = vunpack.c.l.b16 %v646
        %v677 = vunpack.c.l.b16 %v647
        %v678 = vpack.c.b16 %v667, %v666
        %v679 = vpack.c.b16 %v669, %v668
        %v680 = vpack.c.b16 %v671, %v670
        %v681 = vpack.c.b16 %v673, %v672
        %v682 = vpack.c.b16 %v675, %v674
        %v683 = vpack.c.b16 %v677, %v676
        %v691 = vsel %vm427, %v653, 0
        %v694 = vsel %vm427, %v652, 0
        %696 = vmatpush.bf16.msra.mxu0 0
        %697 = vmatpush.bf16.msra.mxu0 0
        %698 = vmatpush.bf16.msra.mxu0 %v683
        %699 = vmatpush.bf16.msra.mxu0 %v682
        %700 = vmatpush.bf16.msra.mxu0 %v681
        %701 = vmatpush.bf16.msra.mxu0 %v680
        %702 = vmatpush.bf16.msra.mxu0 %v679
        %703 = vmatpush.bf16.msra.mxu0 %v678
        %704 = vmatmul.bf16.gmra.mxu0 %v691
        %v705 = vpop.f32.mrf.mxu0
        %v706 = vadd.f32 0.0, %v705
        %v707 = vpop.f32.mrf.mxu0
        %v708 = vadd.f32 0.0, %v707
        %709 = vmatmul.bf16.gmra.mxu0 %v694
        %v710 = vpop.f32.mrf.mxu0
        %v711 = vadd.f32 0.0, %v710
        %v712 = vpop.f32.mrf.mxu0
        %v713 = vadd.f32 0.0, %v712
        %714 = vdwg.mxu0
        %v715 = vadd.f32 %v503, %v706
        %v716 = vadd.f32 %v505, %v708
        %v717 = vadd.f32 %v508, %v711
        %v718 = vadd.f32 %v510, %v713
        %s719 = scalar_lea.vmem %s1, 336
        %v720 = vld [vmem:[%s719] sm:$0xf]
        %v721 = vld [vmem:[%s719 + $0x4] sm:$0xf]
        %v722 = vld [vmem:[%s719 + $0x8] sm:$0xf]
        %v723 = vld [vmem:[%s719 + $0xc] sm:$0xf]
        %v724 = vld [vmem:[%s719 + $0x10] sm:$0xf]
        %v725 = vld [vmem:[%s719 + $0x14] sm:$0xf]
        %v726 = vld [vmem:[%s719 + $0x18] sm:$0xf]
        %v727 = vld [vmem:[%s719 + $0x1c] sm:$0xf]
        %v728 = vld [vmem:[%s719 + $0x20] sm:$0xf]
        %v729 = vld [vmem:[%s719 + $0x24] sm:$0xf]
        %v730 = vld [vmem:[%s719 + $0x28] sm:$0xf]
        %v731 = vld [vmem:[%s719 + $0x2c] sm:$0xf]
        %v744 = vunpack.c.l.b16 %v720
        %v745 = vunpack.c.l.b16 %v721
        %v746 = vunpack.c.l.b16 %v722
        %v747 = vunpack.c.l.b16 %v723
        %v748 = vunpack.c.l.b16 %v724
        %v749 = vunpack.c.l.b16 %v725
        %v750 = vunpack.c.l.b16 %v726
        %v751 = vunpack.c.l.b16 %v727
        %v752 = vunpack.c.l.b16 %v728
        %v753 = vunpack.c.l.b16 %v729
        %v754 = vunpack.c.l.b16 %v730
        %v755 = vunpack.c.l.b16 %v731
        %v756 = vpack.c.b16 %v745, %v744
        %v757 = vpack.c.b16 %v747, %v746
        %v758 = vpack.c.b16 %v749, %v748
        %v759 = vpack.c.b16 %v751, %v750
        %v760 = vpack.c.b16 %v753, %v752
        %v761 = vpack.c.b16 %v755, %v754
        %768 = vmatpush.bf16.msra.mxu0 0
        %769 = vmatpush.bf16.msra.mxu0 0
        %770 = vmatpush.bf16.msra.mxu0 %v761
        %771 = vmatpush.bf16.msra.mxu0 %v760
        %772 = vmatpush.bf16.msra.mxu0 %v759
        %773 = vmatpush.bf16.msra.mxu0 %v758
        %774 = vmatpush.bf16.msra.mxu0 %v757
        %775 = vmatpush.bf16.msra.mxu0 %v756
        %776 = vmatmul.bf16.gmra.mxu0 %v691
        %v777 = vpop.f32.mrf.mxu0
        %v778 = vadd.f32 0.0, %v777
        %v779 = vpop.f32.mrf.mxu0
        %v780 = vadd.f32 0.0, %v779
        %781 = vmatmul.bf16.gmra.mxu0 %v694
        %v782 = vpop.f32.mrf.mxu0
        %v783 = vadd.f32 0.0, %v782
        %v784 = vpop.f32.mrf.mxu0
        %v785 = vadd.f32 0.0, %v784
        %786 = vdwg.mxu0
        %v787 = vadd.f32 %v626, %v778
        %v788 = vadd.f32 %v628, %v780
        %v789 = vadd.f32 %v631, %v783
        %v790 = vadd.f32 %v633, %v785
        %s791 = scalar_lea.vmem %s1, 144
        %v792 = vld [vmem:[%s791] sm:$0xf]
        %v793 = vld [vmem:[%s791 + $0x4] sm:$0xf]
        %v794 = vld [vmem:[%s791 + $0x8] sm:$0xf]
        %v795 = vld [vmem:[%s791 + $0xc] sm:$0xf]
        %v796 = vld [vmem:[%s791 + $0x10] sm:$0xf]
        %v797 = vld [vmem:[%s791 + $0x14] sm:$0xf]
        %v798 = vld [vmem:[%s791 + $0x18] sm:$0xf]
        %v799 = vld [vmem:[%s791 + $0x1c] sm:$0xf]
        %v800 = vld [vmem:[%s791 + $0x20] sm:$0xf]
        %v801 = vld [vmem:[%s791 + $0x24] sm:$0xf]
        %v802 = vld [vmem:[%s791 + $0x28] sm:$0xf]
        %v803 = vld [vmem:[%s791 + $0x2c] sm:$0xf]
        %vm804 = vsmask.f32 6400
        %v805 = vrot.slane %v377, 1
        %v806 = vrot.slane %v379, 2
        %v807 = vor.u32 %v805, %v806
        %v808 = vrot.slane %v388, 1
        %v809 = vrot.slane %v384, 2
        %v810 = vor.u32 %v808, %v809
        %v811 = vsel %vm804, %v807, %v810
        %v824 = vunpack.c.l.b16 %v792
        %v825 = vunpack.c.l.b16 %v793
        %v826 = vunpack.c.l.b16 %v794
        %v827 = vunpack.c.l.b16 %v795
        %v828 = vunpack.c.l.b16 %v796
        %v829 = vunpack.c.l.b16 %v797
        %v830 = vunpack.c.l.b16 %v798
        %v831 = vunpack.c.l.b16 %v799
        %v832 = vunpack.c.l.b16 %v800
        %v833 = vunpack.c.l.b16 %v801
        %v834 = vunpack.c.l.b16 %v802
        %v835 = vunpack.c.l.b16 %v803
        %v836 = vpack.c.b16 %v825, %v824
        %v837 = vpack.c.b16 %v827, %v826
        %v838 = vpack.c.b16 %v829, %v828
        %v839 = vpack.c.b16 %v831, %v830
        %v840 = vpack.c.b16 %v833, %v832
        %v841 = vpack.c.b16 %v835, %v834
        %v849 = vsel %vm427, %v811, 0
        %v852 = vsel %vm427, %v810, 0
        %854 = vmatpush.bf16.msra.mxu0 0
        %855 = vmatpush.bf16.msra.mxu0 0
        %856 = vmatpush.bf16.msra.mxu0 %v841
        %857 = vmatpush.bf16.msra.mxu0 %v840
        %858 = vmatpush.bf16.msra.mxu0 %v839
        %859 = vmatpush.bf16.msra.mxu0 %v838
        %860 = vmatpush.bf16.msra.mxu0 %v837
        %861 = vmatpush.bf16.msra.mxu0 %v836
        %862 = vmatmul.bf16.gmra.mxu0 %v849
        %v863 = vpop.f32.mrf.mxu0
        %v864 = vadd.f32 0.0, %v863
        %v865 = vpop.f32.mrf.mxu0
        %v866 = vadd.f32 0.0, %v865
        %867 = vmatmul.bf16.gmra.mxu0 %v852
        %v868 = vpop.f32.mrf.mxu0
        %v869 = vadd.f32 0.0, %v868
        %v870 = vpop.f32.mrf.mxu0
        %v871 = vadd.f32 0.0, %v870
        %872 = vdwg.mxu0
        %v873 = vadd.f32 %v715, %v864
        %v874 = vadd.f32 %v716, %v866
        %v875 = vadd.f32 %v717, %v869
        %v876 = vadd.f32 %v718, %v871
        %s877 = scalar_lea.vmem %s1, 384
        %v878 = vld [vmem:[%s877] sm:$0xf]
        %v879 = vld [vmem:[%s877 + $0x4] sm:$0xf]
        %v880 = vld [vmem:[%s877 + $0x8] sm:$0xf]
        %v881 = vld [vmem:[%s877 + $0xc] sm:$0xf]
        %v882 = vld [vmem:[%s877 + $0x10] sm:$0xf]
        %v883 = vld [vmem:[%s877 + $0x14] sm:$0xf]
        %v884 = vld [vmem:[%s877 + $0x18] sm:$0xf]
        %v885 = vld [vmem:[%s877 + $0x1c] sm:$0xf]
        %v886 = vld [vmem:[%s877 + $0x20] sm:$0xf]
        %v887 = vld [vmem:[%s877 + $0x24] sm:$0xf]
        %v888 = vld [vmem:[%s877 + $0x28] sm:$0xf]
        %v889 = vld [vmem:[%s877 + $0x2c] sm:$0xf]
        %v902 = vunpack.c.l.b16 %v878
        %v903 = vunpack.c.l.b16 %v879
        %v904 = vunpack.c.l.b16 %v880
        %v905 = vunpack.c.l.b16 %v881
        %v906 = vunpack.c.l.b16 %v882
        %v907 = vunpack.c.l.b16 %v883
        %v908 = vunpack.c.l.b16 %v884
        %v909 = vunpack.c.l.b16 %v885
        %v910 = vunpack.c.l.b16 %v886
        %v911 = vunpack.c.l.b16 %v887
        %v912 = vunpack.c.l.b16 %v888
        %v913 = vunpack.c.l.b16 %v889
        %v914 = vpack.c.b16 %v903, %v902
        %v915 = vpack.c.b16 %v905, %v904
        %v916 = vpack.c.b16 %v907, %v906
        %v917 = vpack.c.b16 %v909, %v908
        %v918 = vpack.c.b16 %v911, %v910
        %v919 = vpack.c.b16 %v913, %v912
        %926 = vmatpush.bf16.msra.mxu0 0
        %927 = vmatpush.bf16.msra.mxu0 0
        %928 = vmatpush.bf16.msra.mxu0 %v919
        %929 = vmatpush.bf16.msra.mxu0 %v918
        %930 = vmatpush.bf16.msra.mxu0 %v917
        %931 = vmatpush.bf16.msra.mxu0 %v916
        %932 = vmatpush.bf16.msra.mxu0 %v915
        %933 = vmatpush.bf16.msra.mxu0 %v914
        %934 = vmatmul.bf16.gmra.mxu0 %v849
        %v935 = vpop.f32.mrf.mxu0
        %v936 = vadd.f32 0.0, %v935
        %v937 = vpop.f32.mrf.mxu0
        %v938 = vadd.f32 0.0, %v937
        %939 = vmatmul.bf16.gmra.mxu0 %v852
        %v940 = vpop.f32.mrf.mxu0
        %v941 = vadd.f32 0.0, %v940
        %v942 = vpop.f32.mrf.mxu0
        %v943 = vadd.f32 0.0, %v942
        %944 = vdwg.mxu0
        %v945 = vadd.f32 %v787, %v936
        %v946 = vadd.f32 %v788, %v938
        %v947 = vadd.f32 %v789, %v941
        %v948 = vadd.f32 %v790, %v943
        %s949 = scalar_lea.vmem %s1, 192
        %v950 = vld [vmem:[%s949] sm:$0xf]
        %v951 = vld [vmem:[%s949 + $0x4] sm:$0xf]
        %v952 = vld [vmem:[%s949 + $0x8] sm:$0xf]
        %v953 = vld [vmem:[%s949 + $0xc] sm:$0xf]
        %v954 = vld [vmem:[%s949 + $0x10] sm:$0xf]
        %v955 = vld [vmem:[%s949 + $0x14] sm:$0xf]
        %v956 = vld [vmem:[%s949 + $0x18] sm:$0xf]
        %v957 = vld [vmem:[%s949 + $0x1c] sm:$0xf]
        %v958 = vld [vmem:[%s949 + $0x20] sm:$0xf]
        %v959 = vld [vmem:[%s949 + $0x24] sm:$0xf]
        %v960 = vld [vmem:[%s949 + $0x28] sm:$0xf]
        %v961 = vld [vmem:[%s949 + $0x2c] sm:$0xf]
        %vm962 = vcmask 1045504
        %v963 = vrot.slane %v335, 2
        %v964 = vrot.slane %v336, 2
        %v965 = vsel %vm962, %v963, %v964
        %v978 = vunpack.c.l.b16 %v950
        %v979 = vunpack.c.l.b16 %v951
        %v980 = vunpack.c.l.b16 %v952
        %v981 = vunpack.c.l.b16 %v953
        %v982 = vunpack.c.l.b16 %v954
        %v983 = vunpack.c.l.b16 %v955
        %v984 = vunpack.c.l.b16 %v956
        %v985 = vunpack.c.l.b16 %v957
        %v986 = vunpack.c.l.b16 %v958
        %v987 = vunpack.c.l.b16 %v959
        %v988 = vunpack.c.l.b16 %v960
        %v989 = vunpack.c.l.b16 %v961
        %v990 = vpack.c.b16 %v979, %v978
        %v991 = vpack.c.b16 %v981, %v980
        %v992 = vpack.c.b16 %v983, %v982
        %v993 = vpack.c.b16 %v985, %v984
        %v994 = vpack.c.b16 %v987, %v986
        %v995 = vpack.c.b16 %v989, %v988
        %v1003 = vsel %vm427, %v965, 0
        %v1006 = vsel %vm427, %v964, 0
        %1008 = vmatpush.bf16.msra.mxu0 0
        %1009 = vmatpush.bf16.msra.mxu0 0
        %1010 = vmatpush.bf16.msra.mxu0 %v995
        %1011 = vmatpush.bf16.msra.mxu0 %v994
        %1012 = vmatpush.bf16.msra.mxu0 %v993
        %1013 = vmatpush.bf16.msra.mxu0 %v992
        %1014 = vmatpush.bf16.msra.mxu0 %v991
        %1015 = vmatpush.bf16.msra.mxu0 %v990
        %1016 = vmatmul.bf16.gmra.mxu0 %v1003
        %v1017 = vpop.f32.mrf.mxu0
        %v1018 = vadd.f32 0.0, %v1017
        %v1019 = vpop.f32.mrf.mxu0
        %v1020 = vadd.f32 0.0, %v1019
        %1021 = vmatmul.bf16.gmra.mxu0 %v1006
        %v1022 = vpop.f32.mrf.mxu0
        %v1023 = vadd.f32 0.0, %v1022
        %v1024 = vpop.f32.mrf.mxu0
        %v1025 = vadd.f32 0.0, %v1024
        %1026 = vdwg.mxu0
        %v1027 = vadd.f32 %v873, %v1018
        %v1028 = vadd.f32 %v874, %v1020
        %v1029 = vadd.f32 %v875, %v1023
        %v1030 = vadd.f32 %v876, %v1025
        %s1031 = scalar_lea.vmem %s1, 432
        %v1032 = vld [vmem:[%s1031] sm:$0xf]
        %v1033 = vld [vmem:[%s1031 + $0x4] sm:$0xf]
        %v1034 = vld [vmem:[%s1031 + $0x8] sm:$0xf]
        %v1035 = vld [vmem:[%s1031 + $0xc] sm:$0xf]
        %v1036 = vld [vmem:[%s1031 + $0x10] sm:$0xf]
        %v1037 = vld [vmem:[%s1031 + $0x14] sm:$0xf]
        %v1038 = vld [vmem:[%s1031 + $0x18] sm:$0xf]
        %v1039 = vld [vmem:[%s1031 + $0x1c] sm:$0xf]
        %v1040 = vld [vmem:[%s1031 + $0x20] sm:$0xf]
        %v1041 = vld [vmem:[%s1031 + $0x24] sm:$0xf]
        %v1042 = vld [vmem:[%s1031 + $0x28] sm:$0xf]
        %v1043 = vld [vmem:[%s1031 + $0x2c] sm:$0xf]
        %v1056 = vunpack.c.l.b16 %v1032
        %v1057 = vunpack.c.l.b16 %v1033
        %v1058 = vunpack.c.l.b16 %v1034
        %v1059 = vunpack.c.l.b16 %v1035
        %v1060 = vunpack.c.l.b16 %v1036
        %v1061 = vunpack.c.l.b16 %v1037
        %v1062 = vunpack.c.l.b16 %v1038
        %v1063 = vunpack.c.l.b16 %v1039
        %v1064 = vunpack.c.l.b16 %v1040
        %v1065 = vunpack.c.l.b16 %v1041
        %v1066 = vunpack.c.l.b16 %v1042
        %v1067 = vunpack.c.l.b16 %v1043
        %v1068 = vpack.c.b16 %v1057, %v1056
        %v1069 = vpack.c.b16 %v1059, %v1058
        %v1070 = vpack.c.b16 %v1061, %v1060
        %v1071 = vpack.c.b16 %v1063, %v1062
        %v1072 = vpack.c.b16 %v1065, %v1064
        %v1073 = vpack.c.b16 %v1067, %v1066
        %1080 = vmatpush.bf16.msra.mxu0 0
        %1081 = vmatpush.bf16.msra.mxu0 0
        %1082 = vmatpush.bf16.msra.mxu0 %v1073
        %1083 = vmatpush.bf16.msra.mxu0 %v1072
        %1084 = vmatpush.bf16.msra.mxu0 %v1071
        %1085 = vmatpush.bf16.msra.mxu0 %v1070
        %1086 = vmatpush.bf16.msra.mxu0 %v1069
        %1087 = vmatpush.bf16.msra.mxu0 %v1068
        %1088 = vmatmul.bf16.gmra.mxu0 %v1003
        %v1089 = vpop.f32.mrf.mxu0
        %v1090 = vadd.f32 0.0, %v1089
        %v1091 = vpop.f32.mrf.mxu0
        %v1092 = vadd.f32 0.0, %v1091
        %1093 = vmatmul.bf16.gmra.mxu0 %v1006
        %v1094 = vpop.f32.mrf.mxu0
        %v1095 = vadd.f32 0.0, %v1094
        %v1096 = vpop.f32.mrf.mxu0
        %v1097 = vadd.f32 0.0, %v1096
        %1098 = vdwg.mxu0
        %v1099 = vadd.f32 %v945, %v1090
        %v1100 = vadd.f32 %v946, %v1092
        %v1101 = vadd.f32 %v947, %v1095
        %v1102 = vadd.f32 %v948, %v1097
        %v1103 = vld [vmem:[%s5] sm:$0x1]
        %v1104 = vld [vmem:[%s5 + $0x1] sm:$0x1]
        %v1105 = vperm.slane %v1103, 0
        %v1106 = vmul.f32 %v1027, %v1105
        %v1107 = vmul.f32 %v1028, %v1105
        %v1108 = vmul.f32 %v1029, %v1105
        %v1109 = vmul.f32 %v1030, %v1105
        %v1110 = vperm.slane %v1104, 0
        %v1111 = vadd.f32 %v1106, %v1110
        %v1112 = vadd.f32 %v1107, %v1110
        %v1113 = vadd.f32 %v1108, %v1110
        %v1114 = vadd.f32 %v1109, %v1110
        %v1115 = vmax.f32 %v1111, 0.0
        %v1116 = vmax.f32 %v1112, 0.0
        %v1117 = vmax.f32 %v1113, 0.0
        %v1118 = vmax.f32 %v1114, 0.0
        %v1119 = vmul.f32 %v1099, %v1105
        %v1120 = vmul.f32 %v1100, %v1105
        %v1121 = vmul.f32 %v1101, %v1105
        %v1122 = vmul.f32 %v1102, %v1105
        %v1123 = vadd.f32 %v1119, %v1110
        %v1124 = vadd.f32 %v1120, %v1110
        %v1125 = vadd.f32 %v1121, %v1110
        %v1126 = vadd.f32 %v1122, %v1110
        %v1127 = vmax.f32 %v1123, 0.0
        %v1128 = vmax.f32 %v1124, 0.0
        %v1129 = vmax.f32 %v1125, 0.0
        %v1130 = vmax.f32 %v1126, 0.0
        %v1131 = vmax.f32 %v1115, %v1127
        %v1132 = vmax.f32 %v1116, %v1128
        %v1133 = vmax.f32 %v1117, %v1129
        %v1134 = vmax.f32 %v1118, %v1130
        %v1136 = vrot.slane %v1131, 1
        %v1138 = vmax.f32 %v1131, %v1136
        %vm1139 = vcmask 909312
        %1140 = vst.msk [vmem:[#allocation2] sm:$0x1] %vm1139, %v1138
        %vm1141 = vcmask 911362
        %1142 = vst.msk [vmem:[#allocation2 - $0x1] sm:$0x4] %vm1141, %v1138
        %vm1143 = vcmask 913412
        %1144 = vst.msk [vmem:[#allocation2 - $0x2] sm:$0x10] %vm1143, %v1138
        %vm1145 = vcmask 915462
        %1146 = vst.msk [vmem:[#allocation2 - $0x3] sm:$0x40] %vm1145, %v1138
        %v1148 = vrot.slane %v1132, 1
        %v1150 = vmax.f32 %v1132, %v1148
        %1151 = vst.msk [vmem:[#allocation2 + $0x4] sm:$0x1] %vm1139, %v1150
        %1152 = vst.msk [vmem:[#allocation2 + $0x3] sm:$0x4] %vm1141, %v1150
        %1153 = vst.msk [vmem:[#allocation2 + $0x2] sm:$0x10] %vm1143, %v1150
        %1154 = vst.msk [vmem:[#allocation2 + $0x1] sm:$0x40] %vm1145, %v1150
        %v1156 = vrot.slane %v1133, 1
        %v1158 = vmax.f32 %v1133, %v1156
        %1159 = vst.msk [vmem:[#allocation2 + $0x8] sm:$0x1] %vm1139, %v1158
        %1160 = vst.msk [vmem:[#allocation2 + $0x7] sm:$0x4] %vm1141, %v1158
        %1161 = vst.msk [vmem:[#allocation2 + $0x6] sm:$0x10] %vm1143, %v1158
        %1162 = vst.msk [vmem:[#allocation2 + $0x5] sm:$0x40] %vm1145, %v1158
        %v1164 = vrot.slane %v1134, 1
        %v1166 = vmax.f32 %v1134, %v1164
        %1167 = vst.msk [vmem:[#allocation2 + $0xc] sm:$0x1] %vm1139, %v1166
        %1168 = vst.msk [vmem:[#allocation2 + $0xb] sm:$0x4] %vm1141, %v1166
        %v1169 = vld [vmem:[#allocation2] sm:$0xff]
        %v1170 = vld [vmem:[#allocation2 + $0x8] sm:$0x3f]
        %v1171 = vpack.c.bf16 %v1170, %v1169
        %v1172 = vld [vmem:[%s2] sm:$0xf]
        %v1173 = vld [vmem:[%s2 + $0x4] sm:$0xf]
        %v1174 = vld [vmem:[%s2 + $0x8] sm:$0xf]
        %v1175 = vld [vmem:[%s2 + $0xc] sm:$0xf]
        %v1176 = vld [vmem:[%s2 + $0x10] sm:$0xf]
        %v1177 = vld [vmem:[%s2 + $0x14] sm:$0xf]
        %v1178 = vld [vmem:[%s2 + $0x18] sm:$0xf]
        %v1179 = vld [vmem:[%s2 + $0x1c] sm:$0xf]
        %v1180 = vld [vmem:[%s2 + $0x20] sm:$0xf]
        %v1181 = vld [vmem:[%s2 + $0x24] sm:$0xf]
        %v1182 = vld [vmem:[%s2 + $0x28] sm:$0xf]
        %v1183 = vld [vmem:[%s2 + $0x2c] sm:$0xf]
        %v1184 = vld [vmem:[%s2 + $0x30] sm:$0xf]
        %v1185 = vld [vmem:[%s2 + $0x34] sm:$0xf]
        %s1186 = scalar_lea.vmem %s2, 56
        %v1187 = vld [vmem:[%s1186] sm:$0xf]
        %v1188 = vld [vmem:[%s1186 + $0x4] sm:$0xf]
        %v1189 = vld [vmem:[%s1186 + $0x8] sm:$0xf]
        %v1190 = vld [vmem:[%s1186 + $0xc] sm:$0xf]
        %v1191 = vld [vmem:[%s1186 + $0x10] sm:$0xf]
        %v1192 = vld [vmem:[%s1186 + $0x14] sm:$0xf]
        %v1193 = vld [vmem:[%s1186 + $0x18] sm:$0xf]
        %v1194 = vld [vmem:[%s1186 + $0x1c] sm:$0xf]
        %v1195 = vld [vmem:[%s1186 + $0x20] sm:$0xf]
        %v1196 = vld [vmem:[%s1186 + $0x24] sm:$0xf]
        %v1197 = vld [vmem:[%s1186 + $0x28] sm:$0xf]
        %v1198 = vld [vmem:[%s1186 + $0x2c] sm:$0xf]
        %v1199 = vld [vmem:[%s1186 + $0x30] sm:$0xf]
        %v1200 = vld [vmem:[%s1186 + $0x34] sm:$0xf]
        %v1202 = vshrl.u32 %v1171, 16
        %v1204 = vshll.u32 %v1171, 16
        %v1206 = vrot.slane %v1204, 1
        %v1207 = vor.u32 %v1202, %v1206
        %v1222 = vunpack.c.l.b16 %v1187
        %v1223 = vunpack.c.l.b16 %v1188
        %v1224 = vunpack.c.l.b16 %v1189
        %v1225 = vunpack.c.l.b16 %v1190
        %v1226 = vunpack.c.l.b16 %v1191
        %v1227 = vunpack.c.l.b16 %v1192
        %v1228 = vunpack.c.l.b16 %v1193
        %v1229 = vunpack.c.l.b16 %v1194
        %v1230 = vunpack.c.l.b16 %v1195
        %v1231 = vunpack.c.l.b16 %v1196
        %v1232 = vunpack.c.l.b16 %v1197
        %v1233 = vunpack.c.l.b16 %v1198
        %v1234 = vunpack.c.l.b16 %v1199
        %v1235 = vunpack.c.l.b16 %v1200
        %v1236 = vpack.c.b16 %v1223, %v1222
        %v1237 = vpack.c.b16 %v1225, %v1224
        %v1238 = vpack.c.b16 %v1227, %v1226
        %v1239 = vpack.c.b16 %v1229, %v1228
        %v1240 = vpack.c.b16 %v1231, %v1230
        %v1241 = vpack.c.b16 %v1233, %v1232
        %v1242 = vpack.c.b16 %v1235, %v1234
        %vm1250 = vcmask 916480
        %v1252 = vsel %vm1250, %v1207, 0
        %1254 = vmatpush.bf16.msra.mxu0 0
        %1255 = vmatpush.bf16.msra.mxu0 %v1242
        %1256 = vmatpush.bf16.msra.mxu0 %v1241
        %1257 = vmatpush.bf16.msra.mxu0 %v1240
        %1258 = vmatpush.bf16.msra.mxu0 %v1239
        %1259 = vmatpush.bf16.msra.mxu0 %v1238
        %1260 = vmatpush.bf16.msra.mxu0 %v1237
        %1261 = vmatpush.bf16.msra.mxu0 %v1236
        %1262 = vmatmul.bf16.gmra.mxu0 %v1252
        %v1263 = vpop.f32.mrf.mxu0
        %v1264 = vadd.f32 0.0, %v1263
        %v1265 = vpop.f32.mrf.mxu0
        %v1266 = vadd.f32 0.0, %v1265
        %1267 = vdwg.mxu0
        %v1282 = vunpack.c.l.b16 %v1172
        %v1283 = vunpack.c.l.b16 %v1173
        %v1284 = vunpack.c.l.b16 %v1174
        %v1285 = vunpack.c.l.b16 %v1175
        %v1286 = vunpack.c.l.b16 %v1176
        %v1287 = vunpack.c.l.b16 %v1177
        %v1288 = vunpack.c.l.b16 %v1178
        %v1289 = vunpack.c.l.b16 %v1179
        %v1290 = vunpack.c.l.b16 %v1180
        %v1291 = vunpack.c.l.b16 %v1181
        %v1292 = vunpack.c.l.b16 %v1182
        %v1293 = vunpack.c.l.b16 %v1183
        %v1294 = vunpack.c.l.b16 %v1184
        %v1295 = vunpack.c.l.b16 %v1185
        %v1296 = vpack.c.b16 %v1283, %v1282
        %v1297 = vpack.c.b16 %v1285, %v1284
        %v1298 = vpack.c.b16 %v1287, %v1286
        %v1299 = vpack.c.b16 %v1289, %v1288
        %v1300 = vpack.c.b16 %v1291, %v1290
        %v1301 = vpack.c.b16 %v1293, %v1292
        %v1302 = vpack.c.b16 %v1295, %v1294
        %v1310 = vsel %vm1250, %v1171, 0
        %1312 = vmatpush.bf16.msra.mxu0 0
        %1313 = vmatpush.bf16.msra.mxu0 %v1302
        %1314 = vmatpush.bf16.msra.mxu0 %v1301
        %1315 = vmatpush.bf16.msra.mxu0 %v1300
        %1316 = vmatpush.bf16.msra.mxu0 %v1299
        %1317 = vmatpush.bf16.msra.mxu0 %v1298
        %1318 = vmatpush.bf16.msra.mxu0 %v1297
        %1319 = vmatpush.bf16.msra.mxu0 %v1296
        %1320 = vmatmul.bf16.gmra.mxu0 %v1310
        %v1321 = vpop.f32.mrf.mxu0
        %v1322 = vadd.f32 %v1264, %v1321
        %v1323 = vpop.f32.mrf.mxu0
        %v1324 = vadd.f32 %v1266, %v1323
        %1325 = vdwg.mxu0
        %s1326 = scalar_lea.vmem %s2, 112
        %v1327 = vld [vmem:[%s1326] sm:$0xf]
        %v1328 = vld [vmem:[%s1326 + $0x4] sm:$0xf]
        %v1329 = vld [vmem:[%s1326 + $0x8] sm:$0xf]
        %v1330 = vld [vmem:[%s1326 + $0xc] sm:$0xf]
        %v1331 = vld [vmem:[%s1326 + $0x10] sm:$0xf]
        %v1332 = vld [vmem:[%s1326 + $0x14] sm:$0xf]
        %v1333 = vld [vmem:[%s1326 + $0x18] sm:$0xf]
        %v1334 = vld [vmem:[%s1326 + $0x1c] sm:$0xf]
        %v1335 = vld [vmem:[%s1326 + $0x20] sm:$0xf]
        %v1336 = vld [vmem:[%s1326 + $0x24] sm:$0xf]
        %v1337 = vld [vmem:[%s1326 + $0x28] sm:$0xf]
        %v1338 = vld [vmem:[%s1326 + $0x2c] sm:$0xf]
        %v1339 = vld [vmem:[%s1326 + $0x30] sm:$0xf]
        %v1340 = vld [vmem:[%s1326 + $0x34] sm:$0xf]
        %v1342 = vrot.slane %v1171, 1
        %v1357 = vunpack.c.l.b16 %v1327
        %v1358 = vunpack.c.l.b16 %v1328
        %v1359 = vunpack.c.l.b16 %v1329
        %v1360 = vunpack.c.l.b16 %v1330
        %v1361 = vunpack.c.l.b16 %v1331
        %v1362 = vunpack.c.l.b16 %v1332
        %v1363 = vunpack.c.l.b16 %v1333
        %v1364 = vunpack.c.l.b16 %v1334
        %v1365 = vunpack.c.l.b16 %v1335
        %v1366 = vunpack.c.l.b16 %v1336
        %v1367 = vunpack.c.l.b16 %v1337
        %v1368 = vunpack.c.l.b16 %v1338
        %v1369 = vunpack.c.l.b16 %v1339
        %v1370 = vunpack.c.l.b16 %v1340
        %v1371 = vpack.c.b16 %v1358, %v1357
        %v1372 = vpack.c.b16 %v1360, %v1359
        %v1373 = vpack.c.b16 %v1362, %v1361
        %v1374 = vpack.c.b16 %v1364, %v1363
        %v1375 = vpack.c.b16 %v1366, %v1365
        %v1376 = vpack.c.b16 %v1368, %v1367
        %v1377 = vpack.c.b16 %v1370, %v1369
        %v1386 = vsel %vm1250, %v1342, 0
        %1388 = vmatpush.bf16.msra.mxu0 0
        %1389 = vmatpush.bf16.msra.mxu0 %v1377
        %1390 = vmatpush.bf16.msra.mxu0 %v1376
        %1391 = vmatpush.bf16.msra.mxu0 %v1375
        %1392 = vmatpush.bf16.msra.mxu0 %v1374
        %1393 = vmatpush.bf16.msra.mxu0 %v1373
        %1394 = vmatpush.bf16.msra.mxu0 %v1372
        %1395 = vmatpush.bf16.msra.mxu0 %v1371
        %1396 = vmatmul.bf16.gmra.mxu0 %v1386
        %v1397 = vpop.f32.mrf.mxu0
        %v1398 = vadd.f32 0.0, %v1397
        %v1399 = vpop.f32.mrf.mxu0
        %v1400 = vadd.f32 0.0, %v1399
        %1401 = vdwg.mxu0
        %v1402 = vadd.f32 %v1322, %v1398
        %v1403 = vadd.f32 %v1324, %v1400
        %s1404 = scalar_lea.vmem %s2, 168
        %v1405 = vld [vmem:[%s1404] sm:$0xf]
        %v1406 = vld [vmem:[%s1404 + $0x4] sm:$0xf]
        %v1407 = vld [vmem:[%s1404 + $0x8] sm:$0xf]
        %v1408 = vld [vmem:[%s1404 + $0xc] sm:$0xf]
        %v1409 = vld [vmem:[%s1404 + $0x10] sm:$0xf]
        %v1410 = vld [vmem:[%s1404 + $0x14] sm:$0xf]
        %v1411 = vld [vmem:[%s1404 + $0x18] sm:$0xf]
        %v1412 = vld [vmem:[%s1404 + $0x1c] sm:$0xf]
        %v1413 = vld [vmem:[%s1404 + $0x20] sm:$0xf]
        %v1414 = vld [vmem:[%s1404 + $0x24] sm:$0xf]
        %v1415 = vld [vmem:[%s1404 + $0x28] sm:$0xf]
        %v1416 = vld [vmem:[%s1404 + $0x2c] sm:$0xf]
        %v1417 = vld [vmem:[%s1404 + $0x30] sm:$0xf]
        %v1418 = vld [vmem:[%s1404 + $0x34] sm:$0xf]
        %v1419 = vrot.slane %v1202, 1
        %v1420 = vrot.slane %v1204, 2
        %v1421 = vor.u32 %v1419, %v1420
        %v1436 = vunpack.c.l.b16 %v1405
        %v1437 = vunpack.c.l.b16 %v1406
        %v1438 = vunpack.c.l.b16 %v1407
        %v1439 = vunpack.c.l.b16 %v1408
        %v1440 = vunpack.c.l.b16 %v1409
        %v1441 = vunpack.c.l.b16 %v1410
        %v1442 = vunpack.c.l.b16 %v1411
        %v1443 = vunpack.c.l.b16 %v1412
        %v1444 = vunpack.c.l.b16 %v1413
        %v1445 = vunpack.c.l.b16 %v1414
        %v1446 = vunpack.c.l.b16 %v1415
        %v1447 = vunpack.c.l.b16 %v1416
        %v1448 = vunpack.c.l.b16 %v1417
        %v1449 = vunpack.c.l.b16 %v1418
        %v1450 = vpack.c.b16 %v1437, %v1436
        %v1451 = vpack.c.b16 %v1439, %v1438
        %v1452 = vpack.c.b16 %v1441, %v1440
        %v1453 = vpack.c.b16 %v1443, %v1442
        %v1454 = vpack.c.b16 %v1445, %v1444
        %v1455 = vpack.c.b16 %v1447, %v1446
        %v1456 = vpack.c.b16 %v1449, %v1448
        %v1465 = vsel %vm1250, %v1421, 0
        %1467 = vmatpush.bf16.msra.mxu0 0
        %1468 = vmatpush.bf16.msra.mxu0 %v1456
        %1469 = vmatpush.bf16.msra.mxu0 %v1455
        %1470 = vmatpush.bf16.msra.mxu0 %v1454
        %1471 = vmatpush.bf16.msra.mxu0 %v1453
        %1472 = vmatpush.bf16.msra.mxu0 %v1452
        %1473 = vmatpush.bf16.msra.mxu0 %v1451
        %1474 = vmatpush.bf16.msra.mxu0 %v1450
        %1475 = vmatmul.bf16.gmra.mxu0 %v1465
        %v1476 = vpop.f32.mrf.mxu0
        %v1477 = vadd.f32 0.0, %v1476
        %v1478 = vpop.f32.mrf.mxu0
        %v1479 = vadd.f32 0.0, %v1478
        %1480 = vdwg.mxu0
        %v1481 = vadd.f32 %v1402, %v1477
        %v1482 = vadd.f32 %v1403, %v1479
        %s1483 = scalar_lea.vmem %s2, 224
        %v1484 = vld [vmem:[%s1483] sm:$0xf]
        %v1485 = vld [vmem:[%s1483 + $0x4] sm:$0xf]
        %v1486 = vld [vmem:[%s1483 + $0x8] sm:$0xf]
        %v1487 = vld [vmem:[%s1483 + $0xc] sm:$0xf]
        %v1488 = vld [vmem:[%s1483 + $0x10] sm:$0xf]
        %v1489 = vld [vmem:[%s1483 + $0x14] sm:$0xf]
        %v1490 = vld [vmem:[%s1483 + $0x18] sm:$0xf]
        %v1491 = vld [vmem:[%s1483 + $0x1c] sm:$0xf]
        %v1492 = vld [vmem:[%s1483 + $0x20] sm:$0xf]
        %v1493 = vld [vmem:[%s1483 + $0x24] sm:$0xf]
        %v1494 = vld [vmem:[%s1483 + $0x28] sm:$0xf]
        %v1495 = vld [vmem:[%s1483 + $0x2c] sm:$0xf]
        %v1496 = vld [vmem:[%s1483 + $0x30] sm:$0xf]
        %v1497 = vld [vmem:[%s1483 + $0x34] sm:$0xf]
        %v1498 = vrot.slane %v1171, 2
        %v1513 = vunpack.c.l.b16 %v1484
        %v1514 = vunpack.c.l.b16 %v1485
        %v1515 = vunpack.c.l.b16 %v1486
        %v1516 = vunpack.c.l.b16 %v1487
        %v1517 = vunpack.c.l.b16 %v1488
        %v1518 = vunpack.c.l.b16 %v1489
        %v1519 = vunpack.c.l.b16 %v1490
        %v1520 = vunpack.c.l.b16 %v1491
        %v1521 = vunpack.c.l.b16 %v1492
        %v1522 = vunpack.c.l.b16 %v1493
        %v1523 = vunpack.c.l.b16 %v1494
        %v1524 = vunpack.c.l.b16 %v1495
        %v1525 = vunpack.c.l.b16 %v1496
        %v1526 = vunpack.c.l.b16 %v1497
        %v1527 = vpack.c.b16 %v1514, %v1513
        %v1528 = vpack.c.b16 %v1516, %v1515
        %v1529 = vpack.c.b16 %v1518, %v1517
        %v1530 = vpack.c.b16 %v1520, %v1519
        %v1531 = vpack.c.b16 %v1522, %v1521
        %v1532 = vpack.c.b16 %v1524, %v1523
        %v1533 = vpack.c.b16 %v1526, %v1525
        %v1542 = vsel %vm1250, %v1498, 0
        %1544 = vmatpush.bf16.msra.mxu0 0
        %1545 = vmatpush.bf16.msra.mxu0 %v1533
        %1546 = vmatpush.bf16.msra.mxu0 %v1532
        %1547 = vmatpush.bf16.msra.mxu0 %v1531
        %1548 = vmatpush.bf16.msra.mxu0 %v1530
        %1549 = vmatpush.bf16.msra.mxu0 %v1529
        %1550 = vmatpush.bf16.msra.mxu0 %v1528
        %1551 = vmatpush.bf16.msra.mxu0 %v1527
        %1552 = vmatmul.bf16.gmra.mxu0 %v1542
        %v1553 = vpop.f32.mrf.mxu0
        %v1554 = vadd.f32 0.0, %v1553
        %v1555 = vpop.f32.mrf.mxu0
        %v1556 = vadd.f32 0.0, %v1555
        %1557 = vdwg.mxu0
        %v1558 = vadd.f32 %v1481, %v1554
        %v1559 = vadd.f32 %v1482, %v1556
        %v1560 = vld [vmem:[%s6] sm:$0x1]
        %v1561 = vperm.slane %v1560, 0
        %v1562 = vmul.f32 %v1558, %v1561
        %v1563 = vmul.f32 %v1559, %v1561
        %v1564 = vld [vmem:[%s6 + $0x1] sm:$0x1]
        %v1565 = vperm.slane %v1564, 0
        %v1566 = vadd.f32 %v1562, %v1565
        %v1567 = vadd.f32 %v1563, %v1565
        %v1568 = vmax.f32 %v1566, 0.0
        %v1569 = vmax.f32 %v1567, 0.0
        %v1570 = vpack.c.bf16 %v1569, %v1568
        %v1571 = vld [vmem:[%s3] sm:$0xf]
        %v1572 = vld [vmem:[%s3 + $0x4] sm:$0xf]
        %v1573 = vld [vmem:[%s3 + $0x8] sm:$0xf]
        %v1574 = vld [vmem:[%s3 + $0xc] sm:$0xf]
        %v1575 = vld [vmem:[%s3 + $0x10] sm:$0xf]
        %v1576 = vld [vmem:[%s3 + $0x14] sm:$0xf]
        %v1577 = vld [vmem:[%s3 + $0x18] sm:$0xf]
        %v1578 = vld [vmem:[%s3 + $0x1c] sm:$0xf]
        %v1579 = vld [vmem:[%s3 + $0x20] sm:$0xf]
        %v1580 = vld [vmem:[%s3 + $0x24] sm:$0xf]
        %v1591 = vunpack.c.l.b16 %v1571
        %v1592 = vunpack.c.l.b16 %v1572
        %v1593 = vunpack.c.l.b16 %v1573
        %v1594 = vunpack.c.l.b16 %v1574
        %v1595 = vunpack.c.l.b16 %v1575
        %v1596 = vunpack.c.l.b16 %v1576
        %v1597 = vunpack.c.l.b16 %v1577
        %v1598 = vunpack.c.l.b16 %v1578
        %v1599 = vunpack.c.l.b16 %v1579
        %v1600 = vunpack.c.l.b16 %v1580
        %v1601 = vpack.c.b16 %v1592, %v1591
        %v1602 = vpack.c.b16 %v1594, %v1593
        %v1603 = vpack.c.b16 %v1596, %v1595
        %v1604 = vpack.c.b16 %v1598, %v1597
        %v1605 = vpack.c.b16 %v1600, %v1599
        %vm1611 = vcmask 654336
        %v1613 = vsel %vm1611, %v1570, 0
        %1615 = vmatpush.bf16.msra.mxu0 0
        %1616 = vmatpush.bf16.msra.mxu0 0
        %1617 = vmatpush.bf16.msra.mxu0 0
        %1618 = vmatpush.bf16.msra.mxu0 %v1605
        %1619 = vmatpush.bf16.msra.mxu0 %v1604
        %1620 = vmatpush.bf16.msra.mxu0 %v1603
        %1621 = vmatpush.bf16.msra.mxu0 %v1602
        %1622 = vmatpush.bf16.msra.mxu0 %v1601
        %1623 = vmatmul.bf16.gmra.mxu0 %v1613
        %v1624 = vpop.f32.mrf.mxu0
        %v1625 = vadd.f32 0.0, %v1624
        %v1626 = vpop.f32.mrf.mxu0
        %v1627 = vadd.f32 0.0, %v1626
        %1628 = vdwg.mxu0
        %s1629 = scalar_lea.vmem %s3, 40
        %v1630 = vld [vmem:[%s1629] sm:$0xf]
        %v1631 = vld [vmem:[%s1629 + $0x4] sm:$0xf]
        %v1632 = vld [vmem:[%s1629 + $0x8] sm:$0xf]
        %v1633 = vld [vmem:[%s1629 + $0xc] sm:$0xf]
        %v1634 = vld [vmem:[%s1629 + $0x10] sm:$0xf]
        %v1635 = vld [vmem:[%s1629 + $0x14] sm:$0xf]
        %v1636 = vld [vmem:[%s1629 + $0x18] sm:$0xf]
        %v1637 = vld [vmem:[%s1629 + $0x1c] sm:$0xf]
        %v1638 = vld [vmem:[%s1629 + $0x20] sm:$0xf]
        %v1639 = vld [vmem:[%s1629 + $0x24] sm:$0xf]
        %v1650 = vunpack.c.l.b16 %v1630
        %v1651 = vunpack.c.l.b16 %v1631
        %v1652 = vunpack.c.l.b16 %v1632
        %v1653 = vunpack.c.l.b16 %v1633
        %v1654 = vunpack.c.l.b16 %v1634
        %v1655 = vunpack.c.l.b16 %v1635
        %v1656 = vunpack.c.l.b16 %v1636
        %v1657 = vunpack.c.l.b16 %v1637
        %v1658 = vunpack.c.l.b16 %v1638
        %v1659 = vunpack.c.l.b16 %v1639
        %v1660 = vpack.c.b16 %v1651, %v1650
        %v1661 = vpack.c.b16 %v1653, %v1652
        %v1662 = vpack.c.b16 %v1655, %v1654
        %v1663 = vpack.c.b16 %v1657, %v1656
        %v1664 = vpack.c.b16 %v1659, %v1658
        %1670 = vmatpush.bf16.msra.mxu0 0
        %1671 = vmatpush.bf16.msra.mxu0 0
        %1672 = vmatpush.bf16.msra.mxu0 0
        %1673 = vmatpush.bf16.msra.mxu0 %v1664
        %1674 = vmatpush.bf16.msra.mxu0 %v1663
        %1675 = vmatpush.bf16.msra.mxu0 %v1662
        %1676 = vmatpush.bf16.msra.mxu0 %v1661
        %1677 = vmatpush.bf16.msra.mxu0 %v1660
        %1678 = vmatmul.bf16.gmra.mxu0 %v1613
        %v1679 = vpop.f32.mrf.mxu0
        %v1680 = vadd.f32 0.0, %v1679
        %v1681 = vpop.f32.mrf.mxu0
        %v1682 = vadd.f32 0.0, %v1681
        %1683 = vdwg.mxu0
        %v1684 = vld [vmem:[%s7] sm:$0x1]
        %v1685 = vld [vmem:[%s7 + $0x1] sm:$0x1]
        %v1686 = vperm.slane %v1684, 0
        %v1687 = vmul.f32 %v1625, %v1686
        %v1688 = vmul.f32 %v1627, %v1686
        %v1689 = vperm.slane %v1685, 0
        %v1690 = vadd.f32 %v1687, %v1689
        %v1691 = vadd.f32 %v1688, %v1689
        %v1692 = vmax.f32 %v1690, 0.0
        %v1693 = vmax.f32 %v1691, 0.0
        %v1694 = vmul.f32 %v1680, %v1686
        %v1695 = vmul.f32 %v1682, %v1686
        %v1696 = vadd.f32 %v1694, %v1689
        %v1697 = vadd.f32 %v1695, %v1689
        %v1698 = vmax.f32 %v1696, 0.0
        %v1699 = vmax.f32 %v1697, 0.0
        %v1700 = vmax.f32 %v1692, %v1698
        %v1701 = vmax.f32 %v1693, %v1699
        %v1703 = vrot.slane %v1700, 1
        %v1705 = vmax.f32 %v1700, %v1703
        %vm1706 = vcmask 647168
        %1707 = vst.msk [vmem:[#allocation3] sm:$0x1] %vm1706, %v1705
        %vm1708 = vcmask 649218
        %1709 = vst.msk [vmem:[#allocation3 - $0x1] sm:$0x4] %vm1708, %v1705
        %vm1710 = vcmask 651268
        %1711 = vst.msk [vmem:[#allocation3 - $0x2] sm:$0x10] %vm1710, %v1705
        %vm1712 = vcmask 653318
        %1713 = vst.msk [vmem:[#allocation3 - $0x3] sm:$0x40] %vm1712, %v1705
        %v1715 = vrot.slane %v1701, 1
        %v1717 = vmax.f32 %v1701, %v1715
        %1718 = vst.msk [vmem:[#allocation3 + $0x4] sm:$0x1] %vm1706, %v1717
        %v1719 = vld [vmem:[%s8] sm:$0x1]
        %v1720 = vld [vmem:[#allocation3] sm:$0x1]
        %v1721 = vpack.c.bf16 %v1720, %v1720
        %v1722 = vld [vmem:[%s4] sm:$0xf]
        %v1723 = vld [vmem:[%s4 + $0x4] sm:$0xf]
        %v1724 = vld [vmem:[%s4 + $0x8] sm:$0xf]
        %v1725 = vld [vmem:[%s4 + $0xc] sm:$0xf]
        %v1726 = vld [vmem:[%s4 + $0x10] sm:$0xf]
        %v1727 = vld [vmem:[%s4 + $0x14] sm:$0xf]
        %v1728 = vld [vmem:[%s4 + $0x18] sm:$0xf]
        %v1729 = vld [vmem:[%s4 + $0x1c] sm:$0xf]
        %v1730 = vld [vmem:[%s4 + $0x20] sm:$0xf]
        %v1731 = vld [vmem:[%s4 + $0x24] sm:$0xf]
        %v1742 = vunpack.c.l.b16 %v1722
        %v1743 = vunpack.c.l.b16 %v1723
        %v1744 = vunpack.c.l.b16 %v1724
        %v1745 = vunpack.c.l.b16 %v1725
        %v1746 = vunpack.c.l.b16 %v1726
        %v1747 = vunpack.c.l.b16 %v1727
        %v1748 = vunpack.c.l.b16 %v1728
        %v1749 = vunpack.c.l.b16 %v1729
        %v1750 = vunpack.c.l.b16 %v1730
        %v1751 = vunpack.c.l.b16 %v1731
        %v1752 = vpack.c.b16 %v1743, %v1742
        %v1753 = vpack.c.b16 %v1745, %v1744
        %v1754 = vpack.c.b16 %v1747, %v1746
        %v1755 = vpack.c.b16 %v1749, %v1748
        %v1756 = vpack.c.b16 %v1751, %v1750
        %v1763 = vsel %vm1611, %v1721, 0
        %1765 = vmatpush.bf16.msra.mxu0 0
        %1766 = vmatpush.bf16.msra.mxu0 0
        %1767 = vmatpush.bf16.msra.mxu0 0
        %1768 = vmatpush.bf16.msra.mxu0 %v1756
        %1769 = vmatpush.bf16.msra.mxu0 %v1755
        %1770 = vmatpush.bf16.msra.mxu0 %v1754
        %1771 = vmatpush.bf16.msra.mxu0 %v1753
        %1772 = vmatpush.bf16.msra.mxu0 %v1752
        %1773 = vmatmul.bf16.gmra.mxu0 %v1763
        %v1774 = vpop.f32.mrf.mxu0
        %v1775 = vadd.f32 0.0, %v1774
        %v1776 = vpop.f32.mrf.mxu0
        %1777 = vdwg.mxu0
        %v1778 = vadd.f32 %v1719, %v1775
        %v1779 = vld [vmem:[#allocation3 + $0x1] sm:$0x1]
        %v1780 = vpack.c.bf16 %v1779, %v1779
        %s1781 = scalar_lea.vmem %s4, 40
        %v1782 = vld [vmem:[%s1781] sm:$0xf]
        %v1783 = vld [vmem:[%s1781 + $0x4] sm:$0xf]
        %v1784 = vld [vmem:[%s1781 + $0x8] sm:$0xf]
        %v1785 = vld [vmem:[%s1781 + $0xc] sm:$0xf]
        %v1786 = vld [vmem:[%s1781 + $0x10] sm:$0xf]
        %v1787 = vld [vmem:[%s1781 + $0x14] sm:$0xf]
        %v1788 = vld [vmem:[%s1781 + $0x18] sm:$0xf]
        %v1789 = vld [vmem:[%s1781 + $0x1c] sm:$0xf]
        %v1790 = vld [vmem:[%s1781 + $0x20] sm:$0xf]
        %v1791 = vld [vmem:[%s1781 + $0x24] sm:$0xf]
        %v1802 = vunpack.c.l.b16 %v1782
        %v1803 = vunpack.c.l.b16 %v1783
        %v1804 = vunpack.c.l.b16 %v1784
        %v1805 = vunpack.c.l.b16 %v1785
        %v1806 = vunpack.c.l.b16 %v1786
        %v1807 = vunpack.c.l.b16 %v1787
        %v1808 = vunpack.c.l.b16 %v1788
        %v1809 = vunpack.c.l.b16 %v1789
        %v1810 = vunpack.c.l.b16 %v1790
        %v1811 = vunpack.c.l.b16 %v1791
        %v1812 = vpack.c.b16 %v1803, %v1802
        %v1813 = vpack.c.b16 %v1805, %v1804
        %v1814 = vpack.c.b16 %v1807, %v1806
        %v1815 = vpack.c.b16 %v1809, %v1808
        %v1816 = vpack.c.b16 %v1811, %v1810
        %v1823 = vsel %vm1611, %v1780, 0
        %1825 = vmatpush.bf16.msra.mxu0 0
        %1826 = vmatpush.bf16.msra.mxu0 0
        %1827 = vmatpush.bf16.msra.mxu0 0
        %1828 = vmatpush.bf16.msra.mxu0 %v1816
        %1829 = vmatpush.bf16.msra.mxu0 %v1815
        %1830 = vmatpush.bf16.msra.mxu0 %v1814
        %1831 = vmatpush.bf16.msra.mxu0 %v1813
        %1832 = vmatpush.bf16.msra.mxu0 %v1812
        %1833 = vmatmul.bf16.gmra.mxu0 %v1823
        %v1834 = vpop.f32.mrf.mxu0
        %v1835 = vadd.f32 0.0, %v1834
        %v1836 = vpop.f32.mrf.mxu0
        %1837 = vdwg.mxu0
        %v1838 = vadd.f32 %v1778, %v1835
        %v1839 = vld [vmem:[#allocation3 + $0x2] sm:$0x1]
        %v1840 = vpack.c.bf16 %v1839, %v1839
        %s1841 = scalar_lea.vmem %s4, 80
        %v1842 = vld [vmem:[%s1841] sm:$0xf]
        %v1843 = vld [vmem:[%s1841 + $0x4] sm:$0xf]
        %v1844 = vld [vmem:[%s1841 + $0x8] sm:$0xf]
        %v1845 = vld [vmem:[%s1841 + $0xc] sm:$0xf]
        %v1846 = vld [vmem:[%s1841 + $0x10] sm:$0xf]
        %v1847 = vld [vmem:[%s1841 + $0x14] sm:$0xf]
        %v1848 = vld [vmem:[%s1841 + $0x18] sm:$0xf]
        %v1849 = vld [vmem:[%s1841 + $0x1c] sm:$0xf]
        %v1850 = vld [vmem:[%s1841 + $0x20] sm:$0xf]
        %v1851 = vld [vmem:[%s1841 + $0x24] sm:$0xf]
        %v1862 = vunpack.c.l.b16 %v1842
        %v1863 = vunpack.c.l.b16 %v1843
        %v1864 = vunpack.c.l.b16 %v1844
        %v1865 = vunpack.c.l.b16 %v1845
        %v1866 = vunpack.c.l.b16 %v1846
        %v1867 = vunpack.c.l.b16 %v1847
        %v1868 = vunpack.c.l.b16 %v1848
        %v1869 = vunpack.c.l.b16 %v1849
        %v1870 = vunpack.c.l.b16 %v1850
        %v1871 = vunpack.c.l.b16 %v1851
        %v1872 = vpack.c.b16 %v1863, %v1862
        %v1873 = vpack.c.b16 %v1865, %v1864
        %v1874 = vpack.c.b16 %v1867, %v1866
        %v1875 = vpack.c.b16 %v1869, %v1868
        %v1876 = vpack.c.b16 %v1871, %v1870
        %v1883 = vsel %vm1611, %v1840, 0
        %1885 = vmatpush.bf16.msra.mxu0 0
        %1886 = vmatpush.bf16.msra.mxu0 0
        %1887 = vmatpush.bf16.msra.mxu0 0
        %1888 = vmatpush.bf16.msra.mxu0 %v1876
        %1889 = vmatpush.bf16.msra.mxu0 %v1875
        %1890 = vmatpush.bf16.msra.mxu0 %v1874
        %1891 = vmatpush.bf16.msra.mxu0 %v1873
        %1892 = vmatpush.bf16.msra.mxu0 %v1872
        %1893 = vmatmul.bf16.gmra.mxu0 %v1883
        %v1894 = vpop.f32.mrf.mxu0
        %v1895 = vadd.f32 0.0, %v1894
        %v1896 = vpop.f32.mrf.mxu0
        %1897 = vdwg.mxu0
        %v1898 = vadd.f32 %v1838, %v1895
        %v1899 = vld [vmem:[#allocation3 + $0x3] sm:$0x1]
        %v1900 = vpack.c.bf16 %v1899, %v1899
        %s1901 = scalar_lea.vmem %s4, 120
        %v1902 = vld [vmem:[%s1901] sm:$0xf]
        %v1903 = vld [vmem:[%s1901 + $0x4] sm:$0xf]
        %v1904 = vld [vmem:[%s1901 + $0x8] sm:$0xf]
        %v1905 = vld [vmem:[%s1901 + $0xc] sm:$0xf]
        %v1906 = vld [vmem:[%s1901 + $0x10] sm:$0xf]
        %v1907 = vld [vmem:[%s1901 + $0x14] sm:$0xf]
        %v1908 = vld [vmem:[%s1901 + $0x18] sm:$0xf]
        %v1909 = vld [vmem:[%s1901 + $0x1c] sm:$0xf]
        %v1910 = vld [vmem:[%s1901 + $0x20] sm:$0xf]
        %v1911 = vld [vmem:[%s1901 + $0x24] sm:$0xf]
        %v1922 = vunpack.c.l.b16 %v1902
        %v1923 = vunpack.c.l.b16 %v1903
        %v1924 = vunpack.c.l.b16 %v1904
        %v1925 = vunpack.c.l.b16 %v1905
        %v1926 = vunpack.c.l.b16 %v1906
        %v1927 = vunpack.c.l.b16 %v1907
        %v1928 = vunpack.c.l.b16 %v1908
        %v1929 = vunpack.c.l.b16 %v1909
        %v1930 = vunpack.c.l.b16 %v1910
        %v1931 = vunpack.c.l.b16 %v1911
        %v1932 = vpack.c.b16 %v1923, %v1922
        %v1933 = vpack.c.b16 %v1925, %v1924
        %v1934 = vpack.c.b16 %v1927, %v1926
        %v1935 = vpack.c.b16 %v1929, %v1928
        %v1936 = vpack.c.b16 %v1931, %v1930
        %v1943 = vsel %vm1611, %v1900, 0
        %1945 = vmatpush.bf16.msra.mxu0 0
        %1946 = vmatpush.bf16.msra.mxu0 0
        %1947 = vmatpush.bf16.msra.mxu0 0
        %1948 = vmatpush.bf16.msra.mxu0 %v1936
        %1949 = vmatpush.bf16.msra.mxu0 %v1935
        %1950 = vmatpush.bf16.msra.mxu0 %v1934
        %1951 = vmatpush.bf16.msra.mxu0 %v1933
        %1952 = vmatpush.bf16.msra.mxu0 %v1932
        %1953 = vmatmul.bf16.gmra.mxu0 %v1943
        %v1954 = vpop.f32.mrf.mxu0
        %v1955 = vadd.f32 0.0, %v1954
        %v1956 = vpop.f32.mrf.mxu0
        %1957 = vdwg.mxu0
        %v1958 = vadd.f32 %v1898, %v1955
        %v1959 = vld [vmem:[#allocation3 + $0x4] sm:$0x1]
        %v1960 = vpack.c.bf16 %v1959, %v1959
        %s1961 = scalar_lea.vmem %s4, 160
        %v1962 = vld [vmem:[%s1961] sm:$0xf]
        %v1963 = vld [vmem:[%s1961 + $0x4] sm:$0xf]
        %v1964 = vld [vmem:[%s1961 + $0x8] sm:$0xf]
        %v1965 = vld [vmem:[%s1961 + $0xc] sm:$0xf]
        %v1966 = vld [vmem:[%s1961 + $0x10] sm:$0xf]
        %v1967 = vld [vmem:[%s1961 + $0x14] sm:$0xf]
        %v1968 = vld [vmem:[%s1961 + $0x18] sm:$0xf]
        %v1969 = vld [vmem:[%s1961 + $0x1c] sm:$0xf]
        %v1970 = vld [vmem:[%s1961 + $0x20] sm:$0xf]
        %v1971 = vld [vmem:[%s1961 + $0x24] sm:$0xf]
        %v1982 = vunpack.c.l.b16 %v1962
        %v1983 = vunpack.c.l.b16 %v1963
        %v1984 = vunpack.c.l.b16 %v1964
        %v1985 = vunpack.c.l.b16 %v1965
        %v1986 = vunpack.c.l.b16 %v1966
        %v1987 = vunpack.c.l.b16 %v1967
        %v1988 = vunpack.c.l.b16 %v1968
        %v1989 = vunpack.c.l.b16 %v1969
        %v1990 = vunpack.c.l.b16 %v1970
        %v1991 = vunpack.c.l.b16 %v1971
        %v1992 = vpack.c.b16 %v1983, %v1982
        %v1993 = vpack.c.b16 %v1985, %v1984
        %v1994 = vpack.c.b16 %v1987, %v1986
        %v1995 = vpack.c.b16 %v1989, %v1988
        %v1996 = vpack.c.b16 %v1991, %v1990
        %v2003 = vsel %vm1611, %v1960, 0
        %2005 = vmatpush.bf16.msra.mxu0 0
        %2006 = vmatpush.bf16.msra.mxu0 0
        %2007 = vmatpush.bf16.msra.mxu0 0
        %2008 = vmatpush.bf16.msra.mxu0 %v1996
        %2009 = vmatpush.bf16.msra.mxu0 %v1995
        %2010 = vmatpush.bf16.msra.mxu0 %v1994
        %2011 = vmatpush.bf16.msra.mxu0 %v1993
        %2012 = vmatpush.bf16.msra.mxu0 %v1992
        %2013 = vmatmul.bf16.gmra.mxu0 %v2003
        %v2014 = vpop.f32.mrf.mxu0
        %v2015 = vadd.f32 0.0, %v2014
        %v2016 = vpop.f32.mrf.mxu0
        %2017 = vdwg.mxu0
        %v2018 = vadd.f32 %v1958, %v2015
        %vm2019 = vcmask 73728
        %2020 = vst.msk [vmem:[%s324] sm:$0x1] %vm2019, %v2018
        %s2021 = sand.u32 %s225, 1
        %s2022 = scalar_lea.sflag [#allocation5], %s2021
        %s2023 = sand.u32 %s225, 1
        %s2024 = scalar_lea.vmem [#allocation4], %s2023
        // Predicated region
        $region57: #{net_forward.1} parent=55 // pred_check
          %p2025 = pneg %p235
        $region58: #{net_forward.1} parent=55 // pred_check_branch
          %2027 = sbr.rel (%p2025) target = $region60
        $region59: #{net_forward.1} parent=55 // pred_region
          %2029 = vsyncadd %s2022, 0
          %s2030 = scalar_lea.hbm %s9, %s23
          %s2032 = sshll.u32 %s2024, 4
          %s2033 = int_to_ptr.vmem [resolvable:$true] %s2032
          %s2034 = sshll.u32 %s2030, 4
          %s2035 = int_to_ptr.hbm [resolvable:$true] %s2034
          %2037 = dma.vmem_to_hbm [thread:$0]  %s2033, 16, %s2035, %s2022
        $region60: #{net_forward.1} parent=55 // pred_fallthru
          _
      $region56: #{net_forward.1} parent=5 // pred_fallthru
        _
      %p2038 = scmp.le.s32.totalorder 2, %s18
      // Predicated region
      $region61: #{net_forward.1} parent=5 // pred_check
        %p2039 = pneg %p2038
      $region62: #{net_forward.1} parent=5 // pred_check_branch
        %2041 = sbr.rel (%p2039) target = $region64
      $region63: #{net_forward.1} parent=5 // pred_region
        %s2042 = ssub.s32 %s18, 2
        // Predicated region
        $region65: #{net_forward.1} parent=63 // pred_check
          %p2043 = pneg %p241
        $region66: #{net_forward.1} parent=63 // pred_check_branch
          %2045 = sbr.rel (%p2043) target = $region68
        $region67: #{net_forward.1} parent=63 // pred_region
          %s2046 = sand.u32 %s226, 1
          %s2047 = scalar_lea.sflag [#allocation5], %s2046
          %s2048 = sand.u32 %s226, 1
          %s2049 = scalar_lea.vmem [#allocation4], %s2048
          %2051 = dma.done %s2047, 16
        $region68: #{net_forward.1} parent=63 // pred_fallthru
          _
      $region64: #{net_forward.1} parent=5 // pred_fallthru
        _
    $region6: #{net_forward.1} parent=1 // loop_footer
      %s22 = sadd.s32 1, %s18
    $region7: #{net_forward.1} parent=1 // loop_footer_branch
      %17 = sbr.rel target = $region3
    $region8: #{net_forward.1} parent=1 // loop_exit
      _
    %2052 = vsyncpa [#allocation5], 1
    %s2053 = scalar_lea.sflag [#allocation5], 1
    %2054 = vsyncpa %s2053, 1

</llo_original>
